<compile_context>
chip_gen: v6e
topology: v6e:2x2x1
jax: 0.10.0
libtpu: 0.0.40
codegen_flags: <defaults>
</compile_context>

<pallas_src>
import jax
import jax.numpy as jnp
from jax import lax
from jax.experimental import pallas as pl
from jax.experimental.pallas import tpu as pltpu


# ---------------------------------------------------------------------------
# Phase 1: serial GRU recurrence — one grid step for the whole sequence.
# ---------------------------------------------------------------------------
def gru_recurrence_kernel(
    x_ref,      # (T, H)  f32  : embedding rows for the whole sequence
    h0_ref,     # (1, H)  f32  : initial hidden state
    w_i_ref,    # (H, 3H) bf16 : fused [r|z|n] input weights
    b_gi_ref,   # (1, 3H) f32  : b_i with b_h's r/z halves pre-folded in
    w_h_ref,    # (H, 3H) bf16 : fused [r|z|n] hidden weights
    b_hn_ref,   # (1, H)  f32  : b_h n-gate slice (cannot fold: scaled by r)
    hist_ref,   # (T, H)  f32  OUT: h_1 .. h_T
    gi_sc,      # (T, 3H) f32  scratch: batched input projections
):
    H = h0_ref.shape[-1]
    T = x_ref.shape[0]
    bf16, f32 = jnp.bfloat16, jnp.float32

    # Batched input projection for the whole sequence (off the serial path).
    x = jnp.maximum(x_ref[...], 0.0)                      # ReLU(embedding)
    gi_sc[...] = jnp.dot(x.astype(bf16), w_i_ref[...],
                         preferred_element_type=f32) + b_gi_ref[...]

    b_hn = b_hn_ref[...]                                  # (1, H)

    def step(t, h):
        gi_t = gi_sc[pl.ds(t, 1), :]                      # (1, 3H)
        gh = jnp.dot(h.astype(bf16), w_h_ref[...],
                     preferred_element_type=f32)          # (1, 3H), no bias
        # One fused sigmoid over the [r|z] halves (single EUP push).
        rz = jax.nn.sigmoid(gi_t[:, :2 * H] + gh[:, :2 * H])
        r = rz[:, :H]
        z = rz[:, H:]
        n = jnp.tanh(gi_t[:, 2 * H:] + r * (gh[:, 2 * H:] + b_hn))
        h_new = (1.0 - z) * n + z * h
        hist_ref[pl.ds(t, 1), :] = h_new
        return h_new

    lax.fori_loop(0, T, step, h0_ref[...])


# ---------------------------------------------------------------------------
# Phase 2: batched output projection + online logsumexp (V-tiled, parallel T).
# ---------------------------------------------------------------------------
def projection_kernel(h_ref, w_out_ref, b_out_ref, logits_ref, lse_ref,
                      m_sc, l_sc):
    j = pl.program_id(1)

    @pl.when(j == 0)
    def _():
        m_sc[...] = jnp.full(m_sc.shape, -jnp.inf, jnp.float32)
        l_sc[...] = jnp.zeros(l_sc.shape, jnp.float32)

    logits = jnp.dot(h_ref[...].astype(jnp.bfloat16), w_out_ref[...],
                     preferred_element_type=jnp.float32) + b_out_ref[...]
    logits_ref[...] = logits

    m_prev = m_sc[...]
    m_new = jnp.maximum(m_prev, jnp.max(logits, axis=1, keepdims=True))
    l_sc[...] = (l_sc[...] * jnp.exp(m_prev - m_new)
                 + jnp.sum(jnp.exp(logits - m_new), axis=1, keepdims=True))
    m_sc[...] = m_new

    @pl.when(j == pl.num_programs(1) - 1)
    def _():
        lse_ref[...] = m_sc[...] + jnp.log(l_sc[...])


# ---------------------------------------------------------------------------
# Phase 3: logp = logits - lse (embarrassingly parallel fix-up).
# ---------------------------------------------------------------------------
def logp_fixup_kernel(logits_ref, lse_ref, out_ref):
    out_ref[...] = logits_ref[...] - lse_ref[...]


def _pick_tile(dim, candidates):
    for c in candidates:
        if dim % c == 0:
            return c
    return dim


@jax.jit
def decoder_gru_decode(tokens, hn, params):
    """T teacher-forced decoder steps.

    tokens: (T,) int32 token ids; hn: (1, 1, H) f32 initial hidden state.
    Returns (log_probs (T, V), hn_new (1, 1, H)); step t equals the PyTorch
    module's forward(tokens[t], hn_t).
    """
    H = params["w_h"].shape[0]
    V = params["w_out"].shape[1]
    T = tokens.shape[0]

    if T == 0:   # static shape under jit: avoid returning uninitialized memory
        return jnp.zeros((0, V), jnp.float32), hn

    # Batched embedding gather — T rows, done once, off the serial path.
    x = params["embedding"][tokens]                        # (T, H) f32

    # Fold b_i + b_h[r|z] into the batched input projection; only the n-gate
    # hidden bias (scaled by r) stays in the recurrence loop.
    b_gi = params["b_i"] + jnp.concatenate(
        [params["b_h"][:, :2 * H], jnp.zeros((1, H), jnp.float32)], axis=1)
    b_hn = params["b_h"][:, 2 * H:]

    # ---- Phase 1: serial recurrence, single grid step. ----
    h_hist = pl.pallas_call(
        gru_recurrence_kernel,
        out_shape=jax.ShapeDtypeStruct((T, H), jnp.float32),
        grid_spec=pltpu.PrefetchScalarGridSpec(
            num_scalar_prefetch=0,
            grid=(1,),
            in_specs=[
                pl.BlockSpec((T, H), lambda i: (0, 0)),
                pl.BlockSpec((1, H), lambda i: (0, 0)),
                pl.BlockSpec((H, 3 * H), lambda i: (0, 0)),
                pl.BlockSpec((1, 3 * H), lambda i: (0, 0)),
                pl.BlockSpec((H, 3 * H), lambda i: (0, 0)),
                pl.BlockSpec((1, H), lambda i: (0, 0)),
            ],
            out_specs=pl.BlockSpec((T, H), lambda i: (0, 0)),
            scratch_shapes=[pltpu.VMEM((T, 3 * H), jnp.float32)],
        ),
        compiler_params=pltpu.CompilerParams(
            dimension_semantics=("arbitrary",)),
    )(x, hn[0], params["w_i"], b_gi, params["w_h"], b_hn)

    # ---- Phase 2: V-tiled projection + online logsumexp. ----
    t_tile = T if T < 8 else _pick_tile(T, (128, 64, 32, 16, 8))
    # TODO(synk): raise v_tile toward 1-8k for realistic vocab sizes
    # (budget 2x(H x Vt x 2B) for w_out + 2x(Tt x Vt x 4B) for logits on v7x).
    v_tile = 128 if V % 128 == 0 else V
    grid_tv = (T // t_tile, V // v_tile)

    logits, lse = pl.pallas_call(
        projection_kernel,
        out_shape=(jax.ShapeDtypeStruct((T, V), jnp.float32),
                   jax.ShapeDtypeStruct((T, 1), jnp.float32)),
        grid_spec=pltpu.PrefetchScalarGridSpec(
            num_scalar_prefetch=0,
            grid=grid_tv,
            in_specs=[
                pl.BlockSpec((t_tile, H), lambda i, j: (i, 0)),
                pl.BlockSpec((H, v_tile), lambda i, j: (0, j)),
                pl.BlockSpec((1, v_tile), lambda i, j: (0, j)),
            ],
            out_specs=(pl.BlockSpec((t_tile, v_tile), lambda i, j: (i, j)),
                       pl.BlockSpec((t_tile, 1), lambda i, j: (i, 0))),
            scratch_shapes=[pltpu.VMEM((t_tile, 1), jnp.float32),
                            pltpu.VMEM((t_tile, 1), jnp.float32)],
        ),
        compiler_params=pltpu.CompilerParams(
            dimension_semantics=("parallel", "arbitrary")),
    )(h_hist, params["w_out"], params["b_out"])

    # ---- Phase 3: subtract the log-partition (fully parallel). ----
    logp = pl.pallas_call(
        logp_fixup_kernel,
        out_shape=jax.ShapeDtypeStruct((T, V), jnp.float32),
        grid_spec=pltpu.PrefetchScalarGridSpec(
            num_scalar_prefetch=0,
            grid=grid_tv,
            in_specs=[
                pl.BlockSpec((t_tile, v_tile), lambda i, j: (i, j)),
                pl.BlockSpec((t_tile, 1), lambda i, j: (i, 0)),
            ],
            out_specs=pl.BlockSpec((t_tile, v_tile), lambda i, j: (i, j)),
        ),
        compiler_params=pltpu.CompilerParams(
            dimension_semantics=("parallel", "parallel")),
    )(logits, lse)

    hn_new = h_hist[T - 1:T].reshape(1, 1, H)
    return logp, hn_new


def init_params(key, hidden_size, output_size):
    """PyTorch-shaped init: GRU/Linear uniform(+-1/sqrt(H)), Embedding N(0,1).

    GRU weights are fused & transposed to (H, 3H) with gate order [r | z | n];
    matmul weights bf16, biases/embedding f32.
    """
    H, V = hidden_size, output_size
    bound = 1.0 / (H ** 0.5)
    keys = jax.random.split(key, 8)

    def u(k, shape):
        return jax.random.uniform(k, shape, jnp.float32, -bound, bound)

    return {
        "embedding": jax.random.normal(keys[0], (V, H), jnp.float32),
        "w_i": u(keys[1], (H, 3 * H)).astype(jnp.bfloat16),
        "w_h": u(keys[2], (H, 3 * H)).astype(jnp.bfloat16),
        "b_i": u(keys[3], (1, 3 * H)),
        "b_h": u(keys[4], (1, 3 * H)),
        "w_out": u(keys[5], (H, V)).astype(jnp.bfloat16),
        "b_out": u(keys[6], (1, V)),
    }


def decoder_gru_ref(tokens, hn, params):
    """Pure-JAX reference mirroring the PyTorch forward step-by-step.

    Uses the same bf16-rounded matmul operands as the kernel so the comparison
    isolates kernel correctness rather than bf16 quantization error.
    """
    H = params["w_h"].shape[0]
    w_i = params["w_i"].astype(jnp.float32)
    w_h = params["w_h"].astype(jnp.float32)
    w_o = params["w_out"].astype(jnp.float32)
    b_i, b_h, b_o = params["b_i"], params["b_h"], params["b_out"]
    emb = params["embedding"]
    hi = jax.lax.Precision.HIGHEST

    def bf16_round(a):
        return a.astype(jnp.bfloat16).astype(jnp.float32)

    h = hn[0]
    logps = []
    for t in range(tokens.shape[0]):
        x = jnp.maximum(emb[tokens[t]][None, :], 0.0)
        gi = jnp.dot(bf16_round(x), w_i, precision=hi) + b_i
        gh = jnp.dot(bf16_round(h), w_h, precision=hi) + b_h
        r = jax.nn.sigmoid(gi[:, :H] + gh[:, :H])
        z = jax.nn.sigmoid(gi[:, H:2 * H] + gh[:, H:2 * H])
        n = jnp.tanh(gi[:, 2 * H:] + r * gh[:, 2 * H:])
        h = (1.0 - z) * n + z * h
        logits = jnp.dot(bf16_round(h), w_o, precision=hi) + b_o
        logps.append(jax.nn.log_softmax(logits, axis=1))
    return jnp.concatenate(logps, axis=0), h.reshape(1, 1, -1)


if __name__ == "__main__":
    hidden_size = 128   # H (lane-aligned so fused-gate slices sit at 0/128/256)
    output_size = 256   # V (vocab) -> 2 V-tiles of 128, exercises online lse
    num_steps = 6       # T decode steps

    key = jax.random.PRNGKey(0)
    pkey, hkey, tkey = jax.random.split(key, 3)
    params = init_params(pkey, hidden_size, output_size)
    tokens = jax.random.randint(tkey, (num_steps,), 0, output_size, dtype=jnp.int32)
    hn = jax.random.normal(hkey, (1, 1, hidden_size), jnp.float32)

    logp, hn_new = jax.block_until_ready(decoder_gru_decode(tokens, hn, params))

    logp_ref, hn_ref = decoder_gru_ref(tokens, hn, params)
    assert logp.shape == (num_steps, output_size)
    assert hn_new.shape == (1, 1, hidden_size)
    assert jnp.allclose(logp, logp_ref, atol=5e-3, rtol=5e-3), \
        float(jnp.max(jnp.abs(logp - logp_ref)))
    assert jnp.allclose(hn_new, hn_ref, atol=5e-3, rtol=5e-3), \
        float(jnp.max(jnp.abs(hn_new - hn_ref)))

    print("KERNEL_OK")
</pallas_src>

<mosaic_0001>
module attributes {stable_mosaic.version = 11 : i64} {
  func.func @projection_kernel(%arg0: i32, %arg1: i32, %arg2: memref<6x128xf32, #tpu.memory_space<vmem>>, %arg3: memref<128x128xbf16, #tpu.memory_space<vmem>>, %arg4: memref<1x128xf32, #tpu.memory_space<vmem>>, %arg5: memref<6x128xf32, #tpu.memory_space<vmem>>, %arg6: memref<6x1xf32, #tpu.memory_space<vmem>>, %arg7: memref<6x1xf32, #tpu.memory_space<vmem>>, %arg8: memref<6x1xf32, #tpu.memory_space<vmem>>) attributes {dimension_semantics = [#tpu.dimension_semantics<parallel>, #tpu.dimension_semantics<arbitrary>], iteration_bounds = array<i64: 1, 2>, scalar_prefetch = 0 : i64, scratch_operands = 2 : i64, tpu.core_type = #tpu.core_type<tc>, window_params = [{transform_indices = @transform_0, window_bounds = array<i64: 6, 128>}, {transform_indices = @transform_1, window_bounds = array<i64: 128, 128>}, {transform_indices = @transform_2, window_bounds = array<i64: 1, 128>}, {transform_indices = @transform_3, window_bounds = array<i64: 6, 128>}, {transform_indices = @transform_4, window_bounds = array<i64: 6, 1>}]} {
    %c0_i32 = arith.constant 0 : i32
    %0 = arith.cmpi eq, %arg1, %c0_i32 : i32
    %1 = arith.extui %0 : i1 to i32
    %c0_i32_0 = arith.constant 0 : i32
    %2 = arith.cmpi ne, %1, %c0_i32_0 : i32
    scf.if %2 {
      %cst_19 = arith.constant 0xFF800000 : f32
      %30 = vector.broadcast %cst_19 : f32 to vector<6x1xf32>
      %c0_20 = arith.constant 0 : index
      %c0_21 = arith.constant 0 : index
      %31 = vector.load %arg7[%c0_20, %c0_21] : memref<6x1xf32, #tpu.memory_space<vmem>>, vector<6x1xf32>
      tpu.vector_store %arg7[%c0_20, %c0_21], %30 {strides = array<i32>} : memref<6x1xf32, #tpu.memory_space<vmem>>, vector<6x1xf32>,
      %cst_22 = arith.constant 0.000000e+00 : f32
      %32 = vector.broadcast %cst_22 : f32 to vector<6x1xf32>
      %c0_23 = arith.constant 0 : index
      %c0_24 = arith.constant 0 : index
      %33 = vector.load %arg8[%c0_23, %c0_24] : memref<6x1xf32, #tpu.memory_space<vmem>>, vector<6x1xf32>
      tpu.vector_store %arg8[%c0_23, %c0_24], %32 {strides = array<i32>} : memref<6x1xf32, #tpu.memory_space<vmem>>, vector<6x1xf32>,
    } else {
    }
    %c0 = arith.constant 0 : index
    %c0_1 = arith.constant 0 : index
    %3 = vector.load %arg2[%c0, %c0_1] : memref<6x128xf32, #tpu.memory_space<vmem>>, vector<6x128xf32>
    %4 = arith.truncf %3 : vector<6x128xf32> to vector<6x128xbf16>
    %c0_2 = arith.constant 0 : index
    %c0_3 = arith.constant 0 : index
    %5 = vector.load %arg3[%c0_2, %c0_3] : memref<128x128xbf16, #tpu.memory_space<vmem>>, vector<128x128xbf16>
    %cst = arith.constant dense<0.000000e+00> : vector<6x128xf32>
    %6 = tpu.matmul %4, %5, %cst {dimension_numbers = #tpu.dot_dimension_numbers<[1], [0], [0], [1], [0, 0, 1, 1], [], []>} : vector<6x128xbf16>, vector<128x128xbf16>, vector<6x128xf32> -> vector<6x128xf32>
    %c0_4 = arith.constant 0 : index
    %c0_5 = arith.constant 0 : index
    %7 = vector.load %arg4[%c0_4, %c0_5] : memref<1x128xf32, #tpu.memory_space<vmem>>, vector<1x128xf32>
    %8 = vector.broadcast %7 : vector<1x128xf32> to vector<6x128xf32>
    %9 = arith.addf %6, %8 : vector<6x128xf32>
    %c0_6 = arith.constant 0 : index
    %c0_7 = arith.constant 0 : index
    %10 = vector.load %arg5[%c0_6, %c0_7] : memref<6x128xf32, #tpu.memory_space<vmem>>, vector<6x128xf32>
    tpu.vector_store %arg5[%c0_6, %c0_7], %9 {strides = array<i32>} : memref<6x128xf32, #tpu.memory_space<vmem>>, vector<6x128xf32>,
    %c0_8 = arith.constant 0 : index
    %c0_9 = arith.constant 0 : index
    %11 = vector.load %arg7[%c0_8, %c0_9] : memref<6x1xf32, #tpu.memory_space<vmem>>, vector<6x1xf32>
    %cst_10 = arith.constant dense<0xFF800000> : vector<6xf32>
    %12 = vector.multi_reduction <maximumf>, %9, %cst_10 [1] : vector<6x128xf32> to vector<6xf32>
    %13 = vector.shape_cast %12 : vector<6xf32> to vector<6x1xf32>
    %14 = arith.maximumf %11, %13 : vector<6x1xf32>
    %c0_11 = arith.constant 0 : index
    %c0_12 = arith.constant 0 : index
    %15 = vector.load %arg8[%c0_11, %c0_12] : memref<6x1xf32, #tpu.memory_space<vmem>>, vector<6x1xf32>
    %16 = arith.subf %11, %14 : vector<6x1xf32>
    %17 = math.exp %16 : vector<6x1xf32>
    %18 = arith.mulf %15, %17 : vector<6x1xf32>
    %19 = vector.broadcast %14 : vector<6x1xf32> to vector<6x128xf32>
    %20 = arith.subf %9, %19 : vector<6x128xf32>
    %21 = math.exp %20 : vector<6x128xf32>
    %cst_13 = arith.constant dense<0.000000e+00> : vector<6xf32>
    %22 = vector.multi_reduction <add>, %21, %cst_13 [1] : vector<6x128xf32> to vector<6xf32>
    %23 = vector.shape_cast %22 : vector<6xf32> to vector<6x1xf32>
    %24 = arith.addf %18, %23 : vector<6x1xf32>
    %c0_14 = arith.constant 0 : index
    %c0_15 = arith.constant 0 : index
    %25 = vector.load %arg8[%c0_14, %c0_15] : memref<6x1xf32, #tpu.memory_space<vmem>>, vector<6x1xf32>
    tpu.vector_store %arg8[%c0_14, %c0_15], %24 {strides = array<i32>} : memref<6x1xf32, #tpu.memory_space<vmem>>, vector<6x1xf32>,
    %c0_16 = arith.constant 0 : index
    %c0_17 = arith.constant 0 : index
    %26 = vector.load %arg7[%c0_16, %c0_17] : memref<6x1xf32, #tpu.memory_space<vmem>>, vector<6x1xf32>
    tpu.vector_store %arg7[%c0_16, %c0_17], %14 {strides = array<i32>} : memref<6x1xf32, #tpu.memory_space<vmem>>, vector<6x1xf32>,
    %c1_i32 = arith.constant 1 : i32
    %27 = arith.cmpi eq, %arg1, %c1_i32 : i32
    %28 = arith.extui %27 : i1 to i32
    %c0_i32_18 = arith.constant 0 : i32
    %29 = arith.cmpi ne, %28, %c0_i32_18 : i32
    scf.if %29 {
      %c0_19 = arith.constant 0 : index
      %c0_20 = arith.constant 0 : index
      %30 = vector.load %arg7[%c0_19, %c0_20] : memref<6x1xf32, #tpu.memory_space<vmem>>, vector<6x1xf32>
      %c0_21 = arith.constant 0 : index
      %c0_22 = arith.constant 0 : index
      %31 = vector.load %arg8[%c0_21, %c0_22] : memref<6x1xf32, #tpu.memory_space<vmem>>, vector<6x1xf32>
      %32 = math.log %31 : vector<6x1xf32>
      %33 = arith.addf %30, %32 : vector<6x1xf32>
      %c0_23 = arith.constant 0 : index
      %c0_24 = arith.constant 0 : index
      %34 = vector.load %arg6[%c0_23, %c0_24] : memref<6x1xf32, #tpu.memory_space<vmem>>, vector<6x1xf32>
      tpu.vector_store %arg6[%c0_23, %c0_24], %33 {strides = array<i32>} : memref<6x1xf32, #tpu.memory_space<vmem>>, vector<6x1xf32>,
    } else {
    }
    return
  }
  func.func @transform_0(%arg0: i32, %arg1: i32) -> (i32, i32) {
    %c0_i32 = arith.constant 0 : i32
    %c0_i32_0 = arith.constant 0 : i32
    return %arg0, %c0_i32 : i32, i32
  }
  func.func @transform_1(%arg0: i32, %arg1: i32) -> (i32, i32) {
    %c0_i32 = arith.constant 0 : i32
    %c0_i32_0 = arith.constant 0 : i32
    return %c0_i32, %arg1 : i32, i32
  }
  func.func @transform_2(%arg0: i32, %arg1: i32) -> (i32, i32) {
    %c0_i32 = arith.constant 0 : i32
    %c0_i32_0 = arith.constant 0 : i32
    return %c0_i32, %arg1 : i32, i32
  }
  func.func @transform_3(%arg0: i32, %arg1: i32) -> (i32, i32) {
    %c0_i32 = arith.constant 0 : i32
    return %arg0, %arg1 : i32, i32
  }
  func.func @transform_4(%arg0: i32, %arg1: i32) -> (i32, i32) {
    %c0_i32 = arith.constant 0 : i32
    %c0_i32_0 = arith.constant 0 : i32
    return %arg0, %c0_i32 : i32, i32
  }
}

module attributes {stable_mosaic.version = 11 : i64} {
  func.func @logp_fixup_kernel(%arg0: i32, %arg1: i32, %arg2: memref<6x128xf32, #tpu.memory_space<vmem>>, %arg3: memref<6x1xf32, #tpu.memory_space<vmem>>, %arg4: memref<6x128xf32, #tpu.memory_space<vmem>>) attributes {dimension_semantics = [#tpu.dimension_semantics<parallel>, #tpu.dimension_semantics<parallel>], iteration_bounds = array<i64: 1, 2>, scalar_prefetch = 0 : i64, scratch_operands = 0 : i64, tpu.core_type = #tpu.core_type<tc>, window_params = [{transform_indices = @transform_0, window_bounds = array<i64: 6, 128>}, {transform_indices = @transform_1, window_bounds = array<i64: 6, 1>}, {transform_indices = @transform_2, window_bounds = array<i64: 6, 128>}]} {
    %c0 = arith.constant 0 : index
    %c0_0 = arith.constant 0 : index
    %0 = vector.load %arg2[%c0, %c0_0] : memref<6x128xf32, #tpu.memory_space<vmem>>, vector<6x128xf32>
    %c0_1 = arith.constant 0 : index
    %c0_2 = arith.constant 0 : index
    %1 = vector.load %arg3[%c0_1, %c0_2] : memref<6x1xf32, #tpu.memory_space<vmem>>, vector<6x1xf32>
    %2 = vector.broadcast %1 : vector<6x1xf32> to vector<6x128xf32>
    %3 = arith.subf %0, %2 : vector<6x128xf32>
    %c0_3 = arith.constant 0 : index
    %c0_4 = arith.constant 0 : index
    %4 = vector.load %arg4[%c0_3, %c0_4] : memref<6x128xf32, #tpu.memory_space<vmem>>, vector<6x128xf32>
    tpu.vector_store %arg4[%c0_3, %c0_4], %3 {strides = array<i32>} : memref<6x128xf32, #tpu.memory_space<vmem>>, vector<6x128xf32>,
    return
  }
  func.func @transform_0(%arg0: i32, %arg1: i32) -> (i32, i32) {
    %c0_i32 = arith.constant 0 : i32
    return %arg0, %arg1 : i32, i32
  }
  func.func @transform_1(%arg0: i32, %arg1: i32) -> (i32, i32) {
    %c0_i32 = arith.constant 0 : i32
    %c0_i32_0 = arith.constant 0 : i32
    return %arg0, %c0_i32 : i32, i32
  }
  func.func @transform_2(%arg0: i32, %arg1: i32) -> (i32, i32) {
    %c0_i32 = arith.constant 0 : i32
    return %arg0, %arg1 : i32, i32
  }
}

module attributes {stable_mosaic.version = 11 : i64} {
  func.func @gru_recurrence_kernel(%arg0: i32, %arg1: memref<6x128xf32, #tpu.memory_space<vmem>>, %arg2: memref<1x128xf32, #tpu.memory_space<vmem>>, %arg3: memref<128x384xbf16, #tpu.memory_space<vmem>>, %arg4: memref<1x384xf32, #tpu.memory_space<vmem>>, %arg5: memref<128x384xbf16, #tpu.memory_space<vmem>>, %arg6: memref<1x128xf32, #tpu.memory_space<vmem>>, %arg7: memref<6x128xf32, #tpu.memory_space<vmem>>, %arg8: memref<6x384xf32, #tpu.memory_space<vmem>>) attributes {dimension_semantics = [#tpu.dimension_semantics<arbitrary>], iteration_bounds = array<i64: 1>, scalar_prefetch = 0 : i64, scratch_operands = 1 : i64, tpu.core_type = #tpu.core_type<tc>, window_params = [{pipeline_mode = #tpu.pipeline_mode<synchronous>, transform_indices = @transform_0, window_bounds = array<i64: 6, 128>}, {pipeline_mode = #tpu.pipeline_mode<synchronous>, transform_indices = @transform_1, window_bounds = array<i64: 1, 128>}, {pipeline_mode = #tpu.pipeline_mode<synchronous>, transform_indices = @transform_2, window_bounds = array<i64: 128, 384>}, {pipeline_mode = #tpu.pipeline_mode<synchronous>, transform_indices = @transform_3, window_bounds = array<i64: 1, 384>}, {pipeline_mode = #tpu.pipeline_mode<synchronous>, transform_indices = @transform_4, window_bounds = array<i64: 128, 384>}, {pipeline_mode = #tpu.pipeline_mode<synchronous>, transform_indices = @transform_5, window_bounds = array<i64: 1, 128>}, {pipeline_mode = #tpu.pipeline_mode<synchronous>, transform_indices = @transform_6, window_bounds = array<i64: 6, 128>}]} {
    %c0 = arith.constant 0 : index
    %c0_0 = arith.constant 0 : index
    %0 = vector.load %arg1[%c0, %c0_0] : memref<6x128xf32, #tpu.memory_space<vmem>>, vector<6x128xf32>
    %cst = arith.constant 0.000000e+00 : f32
    %1 = vector.broadcast %cst : f32 to vector<6x128xf32>
    %2 = arith.maximumf %0, %1 : vector<6x128xf32>
    %3 = arith.truncf %2 : vector<6x128xf32> to vector<6x128xbf16>
    %c0_1 = arith.constant 0 : index
    %c0_2 = arith.constant 0 : index
    %4 = vector.load %arg3[%c0_1, %c0_2] : memref<128x384xbf16, #tpu.memory_space<vmem>>, vector<128x384xbf16>
    %cst_3 = arith.constant dense<0.000000e+00> : vector<6x384xf32>
    %5 = tpu.matmul %3, %4, %cst_3 {dimension_numbers = #tpu.dot_dimension_numbers<[1], [0], [0], [1], [0, 0, 1, 1], [], []>} : vector<6x128xbf16>, vector<128x384xbf16>, vector<6x384xf32> -> vector<6x384xf32>
    %c0_4 = arith.constant 0 : index
    %c0_5 = arith.constant 0 : index
    %6 = vector.load %arg4[%c0_4, %c0_5] : memref<1x384xf32, #tpu.memory_space<vmem>>, vector<1x384xf32>
    %7 = vector.broadcast %6 : vector<1x384xf32> to vector<6x384xf32>
    %8 = arith.addf %5, %7 : vector<6x384xf32>
    %c0_6 = arith.constant 0 : index
    %c0_7 = arith.constant 0 : index
    %9 = vector.load %arg8[%c0_6, %c0_7] : memref<6x384xf32, #tpu.memory_space<vmem>>, vector<6x384xf32>
    tpu.vector_store %arg8[%c0_6, %c0_7], %8 {strides = array<i32>} : memref<6x384xf32, #tpu.memory_space<vmem>>, vector<6x384xf32>,
    %c0_8 = arith.constant 0 : index
    %c0_9 = arith.constant 0 : index
    %10 = vector.load %arg6[%c0_8, %c0_9] : memref<1x128xf32, #tpu.memory_space<vmem>>, vector<1x128xf32>
    %c0_10 = arith.constant 0 : index
    %c0_11 = arith.constant 0 : index
    %11 = vector.load %arg2[%c0_10, %c0_11] : memref<1x128xf32, #tpu.memory_space<vmem>>, vector<1x128xf32>
    %c0_i32 = arith.constant 0 : i32
    %c6_i32 = arith.constant 6 : i32
    %12 = arith.addi %c0_i32, %c6_i32 : i32
    %c1_i32 = arith.constant 1 : i32
    %13 = scf.for %arg9 = %c0_i32 to %12 step %c1_i32 iter_args(%arg10 = %11) -> (vector<1x128xf32>)  : i32 {
      %14 = arith.index_cast %arg9 : i32 to index
      %c0_13 = arith.constant 0 : index
      %15 = vector.load %arg8[%14, %c0_13] : memref<6x384xf32, #tpu.memory_space<vmem>>, vector<1x384xf32>
      %16 = arith.truncf %arg10 : vector<1x128xf32> to vector<1x128xbf16>
      %c0_14 = arith.constant 0 : index
      %c0_15 = arith.constant 0 : index
      %17 = vector.load %arg5[%c0_14, %c0_15] : memref<128x384xbf16, #tpu.memory_space<vmem>>, vector<128x384xbf16>
      %cst_16 = arith.constant dense<0.000000e+00> : vector<1x384xf32>
      %18 = tpu.matmul %16, %17, %cst_16 {dimension_numbers = #tpu.dot_dimension_numbers<[1], [0], [0], [1], [0, 0, 1, 1], [], []>} : vector<1x128xbf16>, vector<128x384xbf16>, vector<1x384xf32> -> vector<1x384xf32>
      %19 = vector.extract_strided_slice %15 {offsets = [0, 0], sizes = [1, 256], strides = [1, 1]} : vector<1x384xf32> to vector<1x256xf32>
      %20 = vector.extract_strided_slice %18 {offsets = [0, 0], sizes = [1, 256], strides = [1, 1]} : vector<1x384xf32> to vector<1x256xf32>
      %21 = arith.addf %19, %20 : vector<1x256xf32>
      %22 = arith.negf %21 : vector<1x256xf32>
      %23 = math.exp %22 : vector<1x256xf32>
      %cst_17 = arith.constant 1.000000e+00 : f32
      %24 = vector.broadcast %cst_17 : f32 to vector<1x256xf32>
      %25 = arith.addf %24, %23 : vector<1x256xf32>
      %26 = arith.divf %24, %25 : vector<1x256xf32>
      %27 = vector.extract_strided_slice %26 {offsets = [0, 0], sizes = [1, 128], strides = [1, 1]} : vector<1x256xf32> to vector<1x128xf32>
      %28 = vector.extract_strided_slice %26 {offsets = [0, 128], sizes = [1, 128], strides = [1, 1]} : vector<1x256xf32> to vector<1x128xf32>
      %29 = vector.extract_strided_slice %15 {offsets = [0, 256], sizes = [1, 128], strides = [1, 1]} : vector<1x384xf32> to vector<1x128xf32>
      %30 = vector.extract_strided_slice %18 {offsets = [0, 256], sizes = [1, 128], strides = [1, 1]} : vector<1x384xf32> to vector<1x128xf32>
      %31 = arith.addf %30, %10 : vector<1x128xf32>
      %32 = arith.mulf %27, %31 : vector<1x128xf32>
      %33 = arith.addf %29, %32 : vector<1x128xf32>
      %34 = math.tanh %33 : vector<1x128xf32>
      %cst_18 = arith.constant 1.000000e+00 : f32
      %35 = vector.broadcast %cst_18 : f32 to vector<1x128xf32>
      %36 = arith.subf %35, %28 : vector<1x128xf32>
      %37 = arith.mulf %36, %34 : vector<1x128xf32>
      %38 = arith.mulf %28, %arg10 : vector<1x128xf32>
      %39 = arith.addf %37, %38 : vector<1x128xf32>
      %40 = arith.index_cast %arg9 : i32 to index
      %c0_19 = arith.constant 0 : index
      %41 = vector.load %arg7[%40, %c0_19] : memref<6x128xf32, #tpu.memory_space<vmem>>, vector<1x128xf32>
      tpu.vector_store %arg7[%40, %c0_19], %39 {strides = array<i32>} : memref<6x128xf32, #tpu.memory_space<vmem>>, vector<1x128xf32>,
      scf.yield %39 : vector<1x128xf32>
    }
    %c6_i32_12 = arith.constant 6 : i32
    return
  }
  func.func @transform_0(%arg0: i32) -> (i32, i32) {
    %c0_i32 = arith.constant 0 : i32
    %c0_i32_0 = arith.constant 0 : i32
    %c0_i32_1 = arith.constant 0 : i32
    return %c0_i32, %c0_i32_0 : i32, i32
  }
  func.func @transform_1(%arg0: i32) -> (i32, i32) {
    %c0_i32 = arith.constant 0 : i32
    %c0_i32_0 = arith.constant 0 : i32
    %c0_i32_1 = arith.constant 0 : i32
    return %c0_i32, %c0_i32_0 : i32, i32
  }
  func.func @transform_2(%arg0: i32) -> (i32, i32) {
    %c0_i32 = arith.constant 0 : i32
    %c0_i32_0 = arith.constant 0 : i32
    %c0_i32_1 = arith.constant 0 : i32
    return %c0_i32, %c0_i32_0 : i32, i32
  }
  func.func @transform_3(%arg0: i32) -> (i32, i32) {
    %c0_i32 = arith.constant 0 : i32
    %c0_i32_0 = arith.constant 0 : i32
    %c0_i32_1 = arith.constant 0 : i32
    return %c0_i32, %c0_i32_0 : i32, i32
  }
  func.func @transform_4(%arg0: i32) -> (i32, i32) {
    %c0_i32 = arith.constant 0 : i32
    %c0_i32_0 = arith.constant 0 : i32
    %c0_i32_1 = arith.constant 0 : i32
    return %c0_i32, %c0_i32_0 : i32, i32
  }
  func.func @transform_5(%arg0: i32) -> (i32, i32) {
    %c0_i32 = arith.constant 0 : i32
    %c0_i32_0 = arith.constant 0 : i32
    %c0_i32_1 = arith.constant 0 : i32
    return %c0_i32, %c0_i32_0 : i32, i32
  }
  func.func @transform_6(%arg0: i32) -> (i32, i32) {
    %c0_i32 = arith.constant 0 : i32
    %c0_i32_0 = arith.constant 0 : i32
    %c0_i32_1 = arith.constant 0 : i32
    return %c0_i32, %c0_i32_0 : i32, i32
  }
}

</mosaic_0001>

<llo_original>
// kernel: decoder_gru_decode.5
$region0: #{decoder_gru_decode.5}
  #allocation0 [shape = 'u32[]', space=smem, size = 0x4, offset = 0x4, fixed_abs, tag = 'smem constant byte address 0x4 - core index']
  #allocation1 [shape = 'u32[144,128]{1,0:T(1,128)}', space=vmem, size = 0x12000, scoped, tag = 'internal scratch']
  %s0 = inlined_call_operand.vmem [shape: f32[6,256], index: 0, kind: input, shape index: {}]
  %s1 = inlined_call_operand.vmem [shape: f32[6,1], index: 1, kind: input, shape index: {}]
  %s2 = inlined_call_operand.hbm [shape: f32[6,256], index: 2, kind: output, shape index: {}]
  %s3 = sld [smem:[#allocation0]]
  $region41: #{decoder_gru_decode.5} parent=0
    _
  %s5 = ssub.s32 1, %s3
  %s6 = scalar_select 0, %s5, %s3
  $region1: #{decoder_gru_decode.5} parent=0
    #allocation2 [shape = 'u8[8192]{0}', space=vmem, size = 0x2000, scoped, tag = 'output window, operand 0']
    #allocation3 [shape = 's32[2]{0}', space=sflag, size = 0x8, scoped, tag = 'scoped memory for decoder_gru_decode.5']
    %7 = vsyncpa [#allocation3], 0
    %s8 = scalar_lea.sflag [#allocation3], 1
    %9 = vsyncpa %s8, 0
    loop: start=0, step=1, limit=4
    $region2: #{decoder_gru_decode.5} parent=1 // loop_pre_header
      _
    $region3: #{decoder_gru_decode.5} parent=1 // loop_header
      %s11 = sphi 0, %s15
      %p12 = scmp.ge.s32.totalorder %s11, 4
      %s18 = sphi 0, %s30
      %s19 = sphi 0, %s26
      %s20 = sphi 0, %s18
      %s21 = sphi 0, %s19
      %s22 = sphi 0, %s20
      %s23 = sphi 0, %s21
      %s35 = sphi 0, %s37
      %s38 = sphi 0, %s35
      %s39 = sphi 0, %s38
      %s55 = sphi 0, %s39
      %s61 = sphi 0, %s63
      %s64 = sphi 0, %s61
      %s65 = sphi 0, %s64
      %s81 = sphi 0, %s65
      %s89 = sphi 0, %s91
      %s92 = sphi 0, %s89
      %s93 = sphi 0, %s92
      %s109 = sphi 0, %s93
    $region4: #{decoder_gru_decode.5} parent=1 // loop_header_branch
      %14 = sbr.rel (%p12) target = $region8
    $region5: #{decoder_gru_decode.5} parent=1 // loop_body
      %s16 = ssub.s32 %s11, 1
      %s17 = ssub.s32 %s11, 2
      %s24 = sadd.s32 1, %s19
      %p25 = scmp.ge.s32.totalorder %s24, 2
      %s26 = scalar_select %p25, 0, %s24
      %s27 = sadd.s32 1, %s18
      %s28 = scalar_select %p25, %s27, %s18
      %p29 = scmp.ge.s32.totalorder %s28, 1
      %s30 = scalar_select %p29, 0, %s28
      %s31 = ssub.s32 %s18, %s30
      %s32 = ssub.s32 %s19, %s26
      %s33 = sor.u32 %s31, %s32
      %p34 = scmp.eq.s32.totalorder %s33, 0
      %s36 = sadd.s32 %s35, 1
      %s37 = scalar_select %p34, %s35, %s36
      %p40 = pneg %p34
      %p41 = scmp.eq.s32.totalorder %s11, 1
      %p42 = por %p40, %p41
      %p43 = scmp.ne.s32.totalorder %s35, %s38
      %p44 = scmp.eq.s32.totalorder %s11, 0
      %p45 = por %p43, %p44
      %p46 = scmp.ne.s32.totalorder %s35, %s38
      %p47 = scmp.eq.s32.totalorder %s16, 1
      %p48 = por %p46, %p47
      %p49 = scmp.ne.s32.totalorder %s38, %s39
      %p50 = scmp.eq.s32.totalorder %s16, 0
      %p51 = por %p49, %p50
      %p52 = scmp.ne.s32.totalorder %s38, %s39
      %p53 = scmp.eq.s32.totalorder %s17, 1
      %p54 = por %p52, %p53
      %p56 = scmp.ne.s32.totalorder %s39, %s55
      %p57 = scmp.eq.s32.totalorder %s17, 0
      %p58 = por %p56, %p57
      %s59 = ssub.s32 %s18, %s30
      %p60 = scmp.eq.s32.totalorder %s59, 0
      %s62 = sadd.s32 %s61, 1
      %s63 = scalar_select %p60, %s61, %s62
      %p66 = pneg %p60
      %p67 = scmp.eq.s32.totalorder %s11, 1
      %p68 = por %p66, %p67
      %p69 = scmp.ne.s32.totalorder %s61, %s64
      %p70 = scmp.eq.s32.totalorder %s11, 0
      %p71 = por %p69, %p70
      %p72 = scmp.ne.s32.totalorder %s61, %s64
      %p73 = scmp.eq.s32.totalorder %s16, 1
      %p74 = por %p72, %p73
      %p75 = scmp.ne.s32.totalorder %s64, %s65
      %p76 = scmp.eq.s32.totalorder %s16, 0
      %p77 = por %p75, %p76
      %p78 = scmp.ne.s32.totalorder %s64, %s65
      %p79 = scmp.eq.s32.totalorder %s17, 1
      %p80 = por %p78, %p79
      %p82 = scmp.ne.s32.totalorder %s65, %s81
      %p83 = scmp.eq.s32.totalorder %s17, 0
      %p84 = por %p82, %p83
      %s85 = ssub.s32 %s18, %s30
      %s86 = ssub.s32 %s19, %s26
      %s87 = sor.u32 %s85, %s86
      %p88 = scmp.eq.s32.totalorder %s87, 0
      %s90 = sadd.s32 %s89, 1
      %s91 = scalar_select %p88, %s89, %s90
      %p94 = pneg %p88
      %p95 = scmp.eq.s32.totalorder %s11, 1
      %p96 = por %p94, %p95
      %p97 = scmp.ne.s32.totalorder %s89, %s92
      %p98 = scmp.eq.s32.totalorder %s11, 0
      %p99 = por %p97, %p98
      %p100 = scmp.ne.s32.totalorder %s89, %s92
      %p101 = scmp.eq.s32.totalorder %s16, 1
      %p102 = por %p100, %p101
      %p103 = scmp.ne.s32.totalorder %s92, %s93
      %p104 = scmp.eq.s32.totalorder %s16, 0
      %p105 = por %p103, %p104
      %p106 = scmp.ne.s32.totalorder %s92, %s93
      %p107 = scmp.eq.s32.totalorder %s17, 1
      %p108 = por %p106, %p107
      %p110 = scmp.ne.s32.totalorder %s93, %s109
      %p111 = scmp.eq.s32.totalorder %s17, 0
      %p112 = por %p110, %p111
      %p113 = scmp.le.s32.totalorder 1, %s11
      %p114 = scmp.lt.s32.totalorder %s11, 3
      %p115 = pnand %p113, %p114
      %p116 = pneg %p115
      // Predicated region
      $region9: #{decoder_gru_decode.5} parent=5 // pred_check
        _
      $region10: #{decoder_gru_decode.5} parent=5 // pred_check_branch
        %118 = sbr.rel (%p115) target = $region12
      $region11: #{decoder_gru_decode.5} parent=5 // pred_region
        %s119 = ssub.s32 %s11, 1
        // Predicated region
        $region13: #{decoder_gru_decode.5} parent=11 // pred_check
          %p120 = pneg %p77
        $region14: #{decoder_gru_decode.5} parent=11 // pred_check_branch
          %122 = sbr.rel (%p120) target = $region16
        $region15: #{decoder_gru_decode.5} parent=11 // pred_region
          %p123 = scmp.lt.s32.totalorder %s20, 0
          %s124 = scalar_select %p123, %s20, 0
          %s125 = smul.addr %s124, 8
          %s126 = scalar_lea.vmem %s1, %s125
        $region16: #{decoder_gru_decode.5} parent=11 // pred_fallthru
          _
      $region12: #{decoder_gru_decode.5} parent=5 // pred_fallthru
        _
      %p127 = scmp.lt.s32.totalorder %s11, 2
      // Predicated region
      $region17: #{decoder_gru_decode.5} parent=5 // pred_check
        %p128 = pneg %p127
      $region18: #{decoder_gru_decode.5} parent=5 // pred_check_branch
        %130 = sbr.rel (%p128) target = $region20
      $region19: #{decoder_gru_decode.5} parent=5 // pred_region
        // Predicated region
        $region21: #{decoder_gru_decode.5} parent=19 // pred_check
          %p131 = pneg %p45
        $region22: #{decoder_gru_decode.5} parent=19 // pred_check_branch
          %133 = sbr.rel (%p131) target = $region24
        $region23: #{decoder_gru_decode.5} parent=19 // pred_region
          %p134 = scmp.lt.s32.totalorder %s18, 0
          %s135 = scalar_select %p134, %s18, 0
          %p136 = scmp.lt.s32.totalorder %s19, 1
          %s137 = scalar_select %p136, %s19, 1
          %s138 = smul.addr %s135, 2
          %s139 = sadd.s32 %s137, %s138
          %s140 = smul.addr %s139, 8
          %s141 = scalar_lea.vmem %s0, %s140
        $region24: #{decoder_gru_decode.5} parent=19 // pred_fallthru
          _
      $region20: #{decoder_gru_decode.5} parent=5 // pred_fallthru
        _
      %p142 = scmp.le.s32.totalorder 1, %s11
      %p143 = scmp.lt.s32.totalorder %s11, 3
      %p144 = pnand %p142, %p143
      %p145 = pneg %p144
      // Predicated region
      $region25: #{decoder_gru_decode.5} parent=5 // pred_check
        _
      $region26: #{decoder_gru_decode.5} parent=5 // pred_check_branch
        %147 = sbr.rel (%p144) target = $region28
      $region27: #{decoder_gru_decode.5} parent=5 // pred_region
        %s148 = ssub.s32 %s11, 1
        %p149 = scmp.lt.s32.totalorder %s20, 0
        %s150 = scalar_select %p149, %s20, 0
        %p151 = scmp.lt.s32.totalorder %s21, 1
        %s152 = scalar_select %p151, %s21, 1
        %s153 = smul.addr %s150, 2
        %s154 = sadd.s32 %s152, %s153
        %s155 = smul.addr %s154, 8
        %s156 = scalar_lea.vmem %s0, %s155
        %p157 = pneg %p51
        %p158 = pneg %p48
        %p159 = scmp.lt.s32.totalorder %s20, 0
        %s160 = scalar_select %p159, %s20, 0
        %s161 = smul.addr %s160, 8
        %s162 = scalar_lea.vmem %s1, %s161
        %p163 = pneg %p77
        %p164 = pneg %p74
        %p165 = pneg %p105
        %p166 = pneg %p102
        %s167 = sand.u32 %s92, 1
        %s168 = scalar_lea.sflag [#allocation3], %s167
        %s169 = sand.u32 %s92, 1
        %s170 = smul.addr %s169, 8
        %s171 = scalar_lea.vmem [#allocation2], %s170
        %p172 = scmp.lt.s32.totalorder %s20, 0
        %s173 = scalar_select %p172, %s20, 0
        %p174 = scmp.lt.s32.totalorder %s21, 1
        %s175 = scalar_select %p174, %s21, 1
        %s176 = smul.addr %s173, 2
        %s177 = sadd.s32 %s175, %s176
        %s178 = smul.addr %s177, 8
        %s179 = scalar_lea.vmem %s0, %s178
        %p180 = scmp.lt.s32.totalorder %s20, 0
        %s181 = scalar_select %p180, %s20, 0
        %s182 = smul.addr %s181, 8
        %s183 = scalar_lea.vmem %s1, %s182
        %v184 = vld [vmem:[%s179] sm:$0x3f]
        %v185 = vld [vmem:[%s183] sm:$0x3f]
        %187 = vset.pattern.permute.xlu0 0
        %188 = vperm.xlu0 %187, %v185
        %v189 = vpop.permute.xlu0 %188
        %v191 = vsub.f32 %v184, %v189
        %192 = vst [vmem:[%s171] sm:$0x3f] %v191
        %s193 = sand.u32 %s92, 1
        %s194 = scalar_lea.sflag [#allocation3], %s193
        %s195 = sand.u32 %s92, 1
        %s196 = smul.addr %s195, 8
        %s197 = scalar_lea.vmem [#allocation2], %s196
        // Predicated region
        $region29: #{decoder_gru_decode.5} parent=27 // pred_check
          %p198 = pneg %p102
        $region30: #{decoder_gru_decode.5} parent=27 // pred_check_branch
          %200 = sbr.rel (%p198) target = $region32
        $region31: #{decoder_gru_decode.5} parent=27 // pred_region
          %s202 = ssub.s32 128, 128
          %203 = vsyncadd %s194, %s202
          %s204 = smul.addr %s20, 2
          %s205 = sadd.s32 %s21, %s204
          %s206 = smul.addr %s205, 128
          %s207 = scalar_lea.hbm %s2, %s206
          %s209 = sshll.u32 %s197, 4
          %s210 = int_to_ptr.vmem [resolvable:$true] %s209
          %212 = dma.vmem_to_hbm [thread:$0]  %s210, 128, %s207, %s194
        $region32: #{decoder_gru_decode.5} parent=27 // pred_fallthru
          _
      $region28: #{decoder_gru_decode.5} parent=5 // pred_fallthru
        _
      %p213 = scmp.le.s32.totalorder 2, %s11
      // Predicated region
      $region33: #{decoder_gru_decode.5} parent=5 // pred_check
        %p214 = pneg %p213
      $region34: #{decoder_gru_decode.5} parent=5 // pred_check_branch
        %216 = sbr.rel (%p214) target = $region36
      $region35: #{decoder_gru_decode.5} parent=5 // pred_region
        %s217 = ssub.s32 %s11, 2
        // Predicated region
        $region37: #{decoder_gru_decode.5} parent=35 // pred_check
          %p218 = pneg %p108
        $region38: #{decoder_gru_decode.5} parent=35 // pred_check_branch
          %220 = sbr.rel (%p218) target = $region40
        $region39: #{decoder_gru_decode.5} parent=35 // pred_region
          %s221 = sand.u32 %s93, 1
          %s222 = scalar_lea.sflag [#allocation3], %s221
          %s223 = sand.u32 %s93, 1
          %s224 = smul.addr %s223, 8
          %s225 = scalar_lea.vmem [#allocation2], %s224
          %226 = dma.done %s222, 128
        $region40: #{decoder_gru_decode.5} parent=35 // pred_fallthru
          _
      $region36: #{decoder_gru_decode.5} parent=5 // pred_fallthru
        _
    $region6: #{decoder_gru_decode.5} parent=1 // loop_footer
      %s15 = sadd.s32 1, %s11
    $region7: #{decoder_gru_decode.5} parent=1 // loop_footer_branch
      %10 = sbr.rel target = $region3
    $region8: #{decoder_gru_decode.5} parent=1 // loop_exit
      _
    %227 = vsyncpa [#allocation3], 1
    %s228 = scalar_lea.sflag [#allocation3], 1
    %229 = vsyncpa %s228, 1

// kernel: decoder_gru_decode.4
$region0: #{decoder_gru_decode.4}
  #allocation0 [shape = 'u32[]', space=smem, size = 0x4, offset = 0x4, fixed_abs, tag = 'smem constant byte address 0x4 - core index']
  #allocation1 [shape = 'u32[144,128]{1,0:T(1,128)}', space=vmem, size = 0x12000, scoped, tag = 'internal scratch']
  #allocation2 [shape = 'f32[6,1]{1,0:T(8,128)}', space=vmem, size = 0x1000, scoped, tag = 'scratch operand']
  #allocation3 [shape = 'f32[6,1]{1,0:T(8,128)}', space=vmem, size = 0x1000, scoped, tag = 'scratch operand']
  %s0 = inlined_call_operand.vmem [shape: f32[6,128], index: 0, kind: input, shape index: {}]
  %s1 = inlined_call_operand.vmem [shape: bf16[128,256], index: 1, kind: input, shape index: {}]
  %s2 = inlined_call_operand.vmem [shape: f32[1,256], index: 2, kind: input, shape index: {}]
  %s3 = inlined_call_operand.vmem [shape: f32[6,256], index: 3, kind: output, shape index: {0}]
  %s4 = inlined_call_operand.vmem [shape: f32[6,1], index: 4, kind: output, shape index: {1}]
  %5 = xla_tuple %s3, %s4
  %s6 = sld [smem:[#allocation0]]
  $region102: #{decoder_gru_decode.4} parent=0
    _
  %s8 = ssub.s32 1, %s6
  %s9 = scalar_select 0, %s8, %s6
  $region1: #{decoder_gru_decode.4} parent=0
    #allocation4 [shape = 'u8[65536]{0}', space=vmem, size = 0x10000, scoped, tag = 'input window, operand 1']
    loop: start=0, step=1, limit=4
    $region2: #{decoder_gru_decode.4} parent=1 // loop_pre_header
      _
    $region3: #{decoder_gru_decode.4} parent=1 // loop_header
      %s11 = sphi 0, %s15
      %p12 = scmp.ge.s32.totalorder %s11, 4
      %s18 = sphi 0, %s30
      %s19 = sphi 0, %s26
      %s20 = sphi 0, %s18
      %s21 = sphi 0, %s19
      %s22 = sphi 0, %s20
      %s23 = sphi 0, %s21
      %s33 = sphi 0, %s35
      %s36 = sphi 0, %s33
      %s37 = sphi 0, %s36
      %s53 = sphi 0, %s37
      %s59 = sphi 0, %s61
      %s62 = sphi 0, %s59
      %s63 = sphi 0, %s62
      %s79 = sphi 0, %s63
      %s85 = sphi 0, %s87
      %s88 = sphi 0, %s85
      %s89 = sphi 0, %s88
      %s105 = sphi 0, %s89
      %s113 = sphi 0, %s115
      %s116 = sphi 0, %s113
      %s117 = sphi 0, %s116
      %s133 = sphi 0, %s117
      %s139 = sphi 0, %s141
      %s142 = sphi 0, %s139
      %s143 = sphi 0, %s142
      %s159 = sphi 0, %s143
    $region4: #{decoder_gru_decode.4} parent=1 // loop_header_branch
      %14 = sbr.rel (%p12) target = $region8
    $region5: #{decoder_gru_decode.4} parent=1 // loop_body
      %s16 = ssub.s32 %s11, 1
      %s17 = ssub.s32 %s11, 2
      %s24 = sadd.s32 1, %s19
      %p25 = scmp.ge.s32.totalorder %s24, 2
      %s26 = scalar_select %p25, 0, %s24
      %s27 = sadd.s32 1, %s18
      %s28 = scalar_select %p25, %s27, %s18
      %p29 = scmp.ge.s32.totalorder %s28, 1
      %s30 = scalar_select %p29, 0, %s28
      %s31 = ssub.s32 %s18, %s30
      %p32 = scmp.eq.s32.totalorder %s31, 0
      %s34 = sadd.s32 %s33, 1
      %s35 = scalar_select %p32, %s33, %s34
      %p38 = pneg %p32
      %p39 = scmp.eq.s32.totalorder %s11, 1
      %p40 = por %p38, %p39
      %p41 = scmp.ne.s32.totalorder %s33, %s36
      %p42 = scmp.eq.s32.totalorder %s11, 0
      %p43 = por %p41, %p42
      %p44 = scmp.ne.s32.totalorder %s33, %s36
      %p45 = scmp.eq.s32.totalorder %s16, 1
      %p46 = por %p44, %p45
      %p47 = scmp.ne.s32.totalorder %s36, %s37
      %p48 = scmp.eq.s32.totalorder %s16, 0
      %p49 = por %p47, %p48
      %p50 = scmp.ne.s32.totalorder %s36, %s37
      %p51 = scmp.eq.s32.totalorder %s17, 1
      %p52 = por %p50, %p51
      %p54 = scmp.ne.s32.totalorder %s37, %s53
      %p55 = scmp.eq.s32.totalorder %s17, 0
      %p56 = por %p54, %p55
      %s57 = ssub.s32 %s19, %s26
      %p58 = scmp.eq.s32.totalorder %s57, 0
      %s60 = sadd.s32 %s59, 1
      %s61 = scalar_select %p58, %s59, %s60
      %p64 = pneg %p58
      %p65 = scmp.eq.s32.totalorder %s11, 1
      %p66 = por %p64, %p65
      %p67 = scmp.ne.s32.totalorder %s59, %s62
      %p68 = scmp.eq.s32.totalorder %s11, 0
      %p69 = por %p67, %p68
      %p70 = scmp.ne.s32.totalorder %s59, %s62
      %p71 = scmp.eq.s32.totalorder %s16, 1
      %p72 = por %p70, %p71
      %p73 = scmp.ne.s32.totalorder %s62, %s63
      %p74 = scmp.eq.s32.totalorder %s16, 0
      %p75 = por %p73, %p74
      %p76 = scmp.ne.s32.totalorder %s62, %s63
      %p77 = scmp.eq.s32.totalorder %s17, 1
      %p78 = por %p76, %p77
      %p80 = scmp.ne.s32.totalorder %s63, %s79
      %p81 = scmp.eq.s32.totalorder %s17, 0
      %p82 = por %p80, %p81
      %s83 = ssub.s32 %s19, %s26
      %p84 = scmp.eq.s32.totalorder %s83, 0
      %s86 = sadd.s32 %s85, 1
      %s87 = scalar_select %p84, %s85, %s86
      %p90 = pneg %p84
      %p91 = scmp.eq.s32.totalorder %s11, 1
      %p92 = por %p90, %p91
      %p93 = scmp.ne.s32.totalorder %s85, %s88
      %p94 = scmp.eq.s32.totalorder %s11, 0
      %p95 = por %p93, %p94
      %p96 = scmp.ne.s32.totalorder %s85, %s88
      %p97 = scmp.eq.s32.totalorder %s16, 1
      %p98 = por %p96, %p97
      %p99 = scmp.ne.s32.totalorder %s88, %s89
      %p100 = scmp.eq.s32.totalorder %s16, 0
      %p101 = por %p99, %p100
      %p102 = scmp.ne.s32.totalorder %s88, %s89
      %p103 = scmp.eq.s32.totalorder %s17, 1
      %p104 = por %p102, %p103
      %p106 = scmp.ne.s32.totalorder %s89, %s105
      %p107 = scmp.eq.s32.totalorder %s17, 0
      %p108 = por %p106, %p107
      %s109 = ssub.s32 %s18, %s30
      %s110 = ssub.s32 %s19, %s26
      %s111 = sor.u32 %s109, %s110
      %p112 = scmp.eq.s32.totalorder %s111, 0
      %s114 = sadd.s32 %s113, 1
      %s115 = scalar_select %p112, %s113, %s114
      %p118 = pneg %p112
      %p119 = scmp.eq.s32.totalorder %s11, 1
      %p120 = por %p118, %p119
      %p121 = scmp.ne.s32.totalorder %s113, %s116
      %p122 = scmp.eq.s32.totalorder %s11, 0
      %p123 = por %p121, %p122
      %p124 = scmp.ne.s32.totalorder %s113, %s116
      %p125 = scmp.eq.s32.totalorder %s16, 1
      %p126 = por %p124, %p125
      %p127 = scmp.ne.s32.totalorder %s116, %s117
      %p128 = scmp.eq.s32.totalorder %s16, 0
      %p129 = por %p127, %p128
      %p130 = scmp.ne.s32.totalorder %s116, %s117
      %p131 = scmp.eq.s32.totalorder %s17, 1
      %p132 = por %p130, %p131
      %p134 = scmp.ne.s32.totalorder %s117, %s133
      %p135 = scmp.eq.s32.totalorder %s17, 0
      %p136 = por %p134, %p135
      %s137 = ssub.s32 %s18, %s30
      %p138 = scmp.eq.s32.totalorder %s137, 0
      %s140 = sadd.s32 %s139, 1
      %s141 = scalar_select %p138, %s139, %s140
      %p144 = pneg %p138
      %p145 = scmp.eq.s32.totalorder %s11, 1
      %p146 = por %p144, %p145
      %p147 = scmp.ne.s32.totalorder %s139, %s142
      %p148 = scmp.eq.s32.totalorder %s11, 0
      %p149 = por %p147, %p148
      %p150 = scmp.ne.s32.totalorder %s139, %s142
      %p151 = scmp.eq.s32.totalorder %s16, 1
      %p152 = por %p150, %p151
      %p153 = scmp.ne.s32.totalorder %s142, %s143
      %p154 = scmp.eq.s32.totalorder %s16, 0
      %p155 = por %p153, %p154
      %p156 = scmp.ne.s32.totalorder %s142, %s143
      %p157 = scmp.eq.s32.totalorder %s17, 1
      %p158 = por %p156, %p157
      %p160 = scmp.ne.s32.totalorder %s143, %s159
      %p161 = scmp.eq.s32.totalorder %s17, 0
      %p162 = por %p160, %p161
      %p163 = scmp.le.s32.totalorder 1, %s11
      %p164 = scmp.lt.s32.totalorder %s11, 3
      %p165 = pnand %p163, %p164
      %p166 = pneg %p165
      // Predicated region
      $region9: #{decoder_gru_decode.4} parent=5 // pred_check
        _
      $region10: #{decoder_gru_decode.4} parent=5 // pred_check_branch
        %168 = sbr.rel (%p165) target = $region12
      $region11: #{decoder_gru_decode.4} parent=5 // pred_region
        %s169 = ssub.s32 %s11, 1
        // Predicated region
        $region13: #{decoder_gru_decode.4} parent=11 // pred_check
          %p170 = pneg %p49
        $region14: #{decoder_gru_decode.4} parent=11 // pred_check_branch
          %172 = sbr.rel (%p170) target = $region16
        $region15: #{decoder_gru_decode.4} parent=11 // pred_region
          %p173 = scmp.lt.s32.totalorder %s20, 0
          %s174 = scalar_select %p173, %s20, 0
          %s175 = smul.addr %s174, 8
          %s176 = scalar_lea.vmem %s0, %s175
        $region16: #{decoder_gru_decode.4} parent=11 // pred_fallthru
          _
      $region12: #{decoder_gru_decode.4} parent=5 // pred_fallthru
        _
      %p177 = scmp.lt.s32.totalorder %s11, 2
      // Predicated region
      $region17: #{decoder_gru_decode.4} parent=5 // pred_check
        %p178 = pneg %p177
      $region18: #{decoder_gru_decode.4} parent=5 // pred_check_branch
        %180 = sbr.rel (%p178) target = $region20
      $region19: #{decoder_gru_decode.4} parent=5 // pred_region
        // Predicated region
        $region21: #{decoder_gru_decode.4} parent=19 // pred_check
          %p181 = pneg %p69
        $region22: #{decoder_gru_decode.4} parent=19 // pred_check_branch
          %183 = sbr.rel (%p181) target = $region24
        $region23: #{decoder_gru_decode.4} parent=19 // pred_region
          %s184 = sand.u32 %s59, 1
          %s185 = sand.u32 %s59, 1
          %s186 = smul.addr %s185, 64
          %s187 = scalar_lea.vmem [#allocation4], %s186
          %s188 = smul.addr %s19, 4
          %s189 = scalar_lea.vmem %s1, %s188
          // Predicated region
          $region25: #{decoder_gru_decode.4} parent=23 // pred_check
            _
          $region26: #{decoder_gru_decode.4} parent=23 // pred_check_branch
            %191 = sbr.rel (0) target = $region28
          $region27: #{decoder_gru_decode.4} parent=23 // pred_region
            // Predicated region
            $region29: #{decoder_gru_decode.4} parent=27 // pred_check
              _
            $region30: #{decoder_gru_decode.4} parent=27 // pred_check_branch
              %193 = sbr.rel target = $region32
            $region31: #{decoder_gru_decode.4} parent=27 // pred_region
              // Predicated region
              $region44: #{decoder_gru_decode.4} parent=31 // pred_check
                _
              $region45: #{decoder_gru_decode.4} parent=31 // pred_check_branch
                %239 = sbr.rel (0) target = $region47
              $region46: #{decoder_gru_decode.4} parent=31 // pred_region
                loop: start=0, step=1, limit=1
                $region48: #{decoder_gru_decode.4} parent=46 // loop_pre_header
                  _
                $region49: #{decoder_gru_decode.4} parent=46 // loop_header
                  %s241 = sphi 0, %s245
                  %p242 = scmp.ge.s32.totalorder %s241, 1
                  %s246 = sphi %s189, %s189
                  %s247 = sphi %s187, %s187
                $region50: #{decoder_gru_decode.4} parent=46 // loop_header_branch
                  %244 = sbr.rel (%p242) target = $region54
                $region51: #{decoder_gru_decode.4} parent=46 // loop_body
                  _
                $region52: #{decoder_gru_decode.4} parent=46 // loop_footer
                  %s245 = sadd.s32 1, %s241
                $region53: #{decoder_gru_decode.4} parent=46 // loop_footer_branch
                  %240 = sbr.rel target = $region49
                $region54: #{decoder_gru_decode.4} parent=46 // loop_exit
                  _
                %s249 = ssub.s32 16, 1
                loop: start=0, step=1, limit=1
                $region55: #{decoder_gru_decode.4} parent=46 // loop_pre_header
                  _
                $region56: #{decoder_gru_decode.4} parent=46 // loop_header
                  %s251 = sphi 0, %s255
                  %p252 = scmp.ge.s32.totalorder %s251, 1
                  %s256 = sphi %s189, %s189
                  %s257 = sphi %s187, %s187
                $region57: #{decoder_gru_decode.4} parent=46 // loop_header_branch
                  %254 = sbr.rel (%p252) target = $region61
                $region58: #{decoder_gru_decode.4} parent=46 // loop_body
                  %v258 = vld [vmem:[%s256] sm:%s249]
                  %259 = vst [vmem:[%s257] sm:%s249] %v258
                  %v260 = vld [vmem:[%s256 + $0x8] sm:%s249]
                  %261 = vst [vmem:[%s257 + $0x4] sm:%s249] %v260
                  %v262 = vld [vmem:[%s256 + $0x10] sm:%s249]
                  %263 = vst [vmem:[%s257 + $0x8] sm:%s249] %v262
                  %v264 = vld [vmem:[%s256 + $0x18] sm:%s249]
                  %265 = vst [vmem:[%s257 + $0xc] sm:%s249] %v264
                  %v266 = vld [vmem:[%s256 + $0x20] sm:%s249]
                  %267 = vst [vmem:[%s257 + $0x10] sm:%s249] %v266
                  %v268 = vld [vmem:[%s256 + $0x28] sm:%s249]
                  %269 = vst [vmem:[%s257 + $0x14] sm:%s249] %v268
                  %v270 = vld [vmem:[%s256 + $0x30] sm:%s249]
                  %271 = vst [vmem:[%s257 + $0x18] sm:%s249] %v270
                  %v272 = vld [vmem:[%s256 + $0x38] sm:%s249]
                  %273 = vst [vmem:[%s257 + $0x1c] sm:%s249] %v272
                  %v274 = vld [vmem:[%s256 + $0x40] sm:%s249]
                  %275 = vst [vmem:[%s257 + $0x20] sm:%s249] %v274
                  %v276 = vld [vmem:[%s256 + $0x48] sm:%s249]
                  %277 = vst [vmem:[%s257 + $0x24] sm:%s249] %v276
                  %v278 = vld [vmem:[%s256 + $0x50] sm:%s249]
                  %279 = vst [vmem:[%s257 + $0x28] sm:%s249] %v278
                  %v280 = vld [vmem:[%s256 + $0x58] sm:%s249]
                  %281 = vst [vmem:[%s257 + $0x2c] sm:%s249] %v280
                  %v282 = vld [vmem:[%s256 + $0x60] sm:%s249]
                  %283 = vst [vmem:[%s257 + $0x30] sm:%s249] %v282
                  %v284 = vld [vmem:[%s256 + $0x68] sm:%s249]
                  %285 = vst [vmem:[%s257 + $0x34] sm:%s249] %v284
                  %v286 = vld [vmem:[%s256 + $0x70] sm:%s249]
                  %287 = vst [vmem:[%s257 + $0x38] sm:%s249] %v286
                  %v288 = vld [vmem:[%s256 + $0x78] sm:%s249]
                  %289 = vst [vmem:[%s257 + $0x3c] sm:%s249] %v288
                $region59: #{decoder_gru_decode.4} parent=46 // loop_footer
                  %s255 = sadd.s32 1, %s251
                $region60: #{decoder_gru_decode.4} parent=46 // loop_footer_branch
                  %250 = sbr.rel target = $region56
                $region61: #{decoder_gru_decode.4} parent=46 // loop_exit
                  _
              $region47: #{decoder_gru_decode.4} parent=31 // pred_fallthru
                _
            $region32: #{decoder_gru_decode.4} parent=27 // pred_fallthru
              _
            // Predicated region
            $region33: #{decoder_gru_decode.4} parent=27 // pred_check
              _
            $region34: #{decoder_gru_decode.4} parent=27 // pred_check_branch
              %195 = sbr.rel (0) target = $region36
            $region35: #{decoder_gru_decode.4} parent=27 // pred_region
              %s197 = ssub.s32 16, 1
              loop: start=0, step=1, limit=1
              $region37: #{decoder_gru_decode.4} parent=35 // loop_pre_header
                _
              $region38: #{decoder_gru_decode.4} parent=35 // loop_header
                %s199 = sphi 0, %s203
                %p200 = scmp.ge.s32.totalorder %s199, 1
                %s204 = sphi %s189, %s189
                %s205 = sphi %s187, %s187
              $region39: #{decoder_gru_decode.4} parent=35 // loop_header_branch
                %202 = sbr.rel (%p200) target = $region43
              $region40: #{decoder_gru_decode.4} parent=35 // loop_body
                %v206 = vld [vmem:[%s204] sm:%s197]
                %207 = vst [vmem:[%s205] sm:%s197] %v206
                %v208 = vld [vmem:[%s204 + $0x8] sm:%s197]
                %209 = vst [vmem:[%s205 + $0x4] sm:%s197] %v208
                %v210 = vld [vmem:[%s204 + $0x10] sm:%s197]
                %211 = vst [vmem:[%s205 + $0x8] sm:%s197] %v210
                %v212 = vld [vmem:[%s204 + $0x18] sm:%s197]
                %213 = vst [vmem:[%s205 + $0xc] sm:%s197] %v212
                %v214 = vld [vmem:[%s204 + $0x20] sm:%s197]
                %215 = vst [vmem:[%s205 + $0x10] sm:%s197] %v214
                %v216 = vld [vmem:[%s204 + $0x28] sm:%s197]
                %217 = vst [vmem:[%s205 + $0x14] sm:%s197] %v216
                %v218 = vld [vmem:[%s204 + $0x30] sm:%s197]
                %219 = vst [vmem:[%s205 + $0x18] sm:%s197] %v218
                %v220 = vld [vmem:[%s204 + $0x38] sm:%s197]
                %221 = vst [vmem:[%s205 + $0x1c] sm:%s197] %v220
                %v222 = vld [vmem:[%s204 + $0x40] sm:%s197]
                %223 = vst [vmem:[%s205 + $0x20] sm:%s197] %v222
                %v224 = vld [vmem:[%s204 + $0x48] sm:%s197]
                %225 = vst [vmem:[%s205 + $0x24] sm:%s197] %v224
                %v226 = vld [vmem:[%s204 + $0x50] sm:%s197]
                %227 = vst [vmem:[%s205 + $0x28] sm:%s197] %v226
                %v228 = vld [vmem:[%s204 + $0x58] sm:%s197]
                %229 = vst [vmem:[%s205 + $0x2c] sm:%s197] %v228
                %v230 = vld [vmem:[%s204 + $0x60] sm:%s197]
                %231 = vst [vmem:[%s205 + $0x30] sm:%s197] %v230
                %v232 = vld [vmem:[%s204 + $0x68] sm:%s197]
                %233 = vst [vmem:[%s205 + $0x34] sm:%s197] %v232
                %v234 = vld [vmem:[%s204 + $0x70] sm:%s197]
                %235 = vst [vmem:[%s205 + $0x38] sm:%s197] %v234
                %v236 = vld [vmem:[%s204 + $0x78] sm:%s197]
                %237 = vst [vmem:[%s205 + $0x3c] sm:%s197] %v236
              $region41: #{decoder_gru_decode.4} parent=35 // loop_footer
                %s203 = sadd.s32 1, %s199
              $region42: #{decoder_gru_decode.4} parent=35 // loop_footer_branch
                %198 = sbr.rel target = $region38
              $region43: #{decoder_gru_decode.4} parent=35 // loop_exit
                _
            $region36: #{decoder_gru_decode.4} parent=27 // pred_fallthru
              _
          $region28: #{decoder_gru_decode.4} parent=23 // pred_fallthru
            _
          %290 = vnop
        $region24: #{decoder_gru_decode.4} parent=19 // pred_fallthru
          _
        // Predicated region
        $region62: #{decoder_gru_decode.4} parent=19 // pred_check
          %p291 = pneg %p95
        $region63: #{decoder_gru_decode.4} parent=19 // pred_check_branch
          %293 = sbr.rel (%p291) target = $region65
        $region64: #{decoder_gru_decode.4} parent=19 // pred_region
          %p294 = scmp.lt.s32.totalorder %s19, 1
          %s295 = scalar_select %p294, %s19, 1
          %s296 = scalar_lea.vmem %s2, %s295
        $region65: #{decoder_gru_decode.4} parent=19 // pred_fallthru
          _
      $region20: #{decoder_gru_decode.4} parent=5 // pred_fallthru
        _
      %p297 = scmp.le.s32.totalorder 1, %s11
      %p298 = scmp.lt.s32.totalorder %s11, 3
      %p299 = pnand %p297, %p298
      %p300 = pneg %p299
      // Predicated region
      $region66: #{decoder_gru_decode.4} parent=5 // pred_check
        _
      $region67: #{decoder_gru_decode.4} parent=5 // pred_check_branch
        %302 = sbr.rel (%p299) target = $region69
      $region68: #{decoder_gru_decode.4} parent=5 // pred_region
        %s303 = ssub.s32 %s11, 1
        %s304 = sand.u32 %s62, 1
        %s305 = sand.u32 %s62, 1
        %s306 = smul.addr %s305, 64
        %s307 = scalar_lea.vmem [#allocation4], %s306
        // Predicated region
        $region70: #{decoder_gru_decode.4} parent=68 // pred_check
          %p308 = pneg %p75
        $region71: #{decoder_gru_decode.4} parent=68 // pred_check_branch
          %310 = sbr.rel (%p308) target = $region73
        $region72: #{decoder_gru_decode.4} parent=68 // pred_region
          _
        $region73: #{decoder_gru_decode.4} parent=68 // pred_fallthru
          _
        %p311 = scmp.lt.s32.totalorder %s20, 0
        %s312 = scalar_select %p311, %s20, 0
        %s313 = smul.addr %s312, 8
        %s314 = scalar_lea.vmem %s0, %s313
        %p315 = pneg %p49
        %p316 = pneg %p46
        %s317 = sand.u32 %s62, 1
        %s318 = sand.u32 %s62, 1
        %s319 = smul.addr %s318, 64
        %s320 = scalar_lea.vmem [#allocation4], %s319
        %p321 = pneg %p75
        %p322 = pneg %p72
        %p323 = scmp.lt.s32.totalorder %s21, 1
        %s324 = scalar_select %p323, %s21, 1
        %s325 = scalar_lea.vmem %s2, %s324
        %p326 = pneg %p101
        %p327 = pneg %p98
        %p328 = pneg %p129
        %p329 = pneg %p126
        %p330 = scmp.lt.s32.totalorder %s20, 0
        %s331 = scalar_select %p330, %s20, 0
        %p332 = scmp.lt.s32.totalorder %s21, 1
        %s333 = scalar_select %p332, %s21, 1
        %s334 = smul.addr %s331, 2
        %s335 = sadd.s32 %s333, %s334
        %s336 = smul.addr %s335, 8
        %s337 = scalar_lea.vmem %s3, %s336
        %p338 = pneg %p155
        %p339 = pneg %p152
        %p340 = scmp.lt.s32.totalorder %s20, 0
        %s341 = scalar_select %p340, %s20, 0
        %s342 = smul.addr %s341, 8
        %s343 = scalar_lea.vmem %s4, %s342
        %p344 = scmp.lt.s32.totalorder %s20, 0
        %s345 = scalar_select %p344, %s20, 0
        %s346 = smul.addr %s345, 8
        %s347 = scalar_lea.vmem %s0, %s346
        %p348 = scmp.lt.s32.totalorder %s21, 1
        %s349 = scalar_select %p348, %s21, 1
        %s350 = scalar_lea.vmem %s2, %s349
        %p351 = scmp.lt.s32.totalorder %s20, 0
        %s352 = scalar_select %p351, %s20, 0
        %p353 = scmp.lt.s32.totalorder %s21, 1
        %s354 = scalar_select %p353, %s21, 1
        %s355 = smul.addr %s352, 2
        %s356 = sadd.s32 %s354, %s355
        %s357 = smul.addr %s356, 8
        %s358 = scalar_lea.vmem %s3, %s357
        %p359 = scmp.lt.s32.totalorder %s20, 0
        %s360 = scalar_select %p359, %s20, 0
        %s361 = smul.addr %s360, 8
        %s362 = scalar_lea.vmem %s4, %s361
        %p364 = scmp.eq.s32.totalorder %s21, 0
        // Predicated region
        $region74: #{decoder_gru_decode.4} parent=68 // pred_check
          %p365 = pneg %p364
        $region75: #{decoder_gru_decode.4} parent=68 // pred_check_branch
          %367 = sbr.rel (%p365) target = $region77
        $region76: #{decoder_gru_decode.4} parent=68 // pred_region
          %vm368 = vcmask 5120
          %369 = vst.msk [vmem:[#allocation2] sm:$0x3f] %vm368, -inf
          %370 = vst.msk [vmem:[#allocation3] sm:$0x3f] %vm368, 0.0
        $region77: #{decoder_gru_decode.4} parent=68 // pred_fallthru
          _
        %v371 = vld [vmem:[%s347] sm:$0x3f]
        %v372 = vpack.c.bf16 %v371, %v371
        %v373 = vld [vmem:[%s307] sm:$0xf]
        %v374 = vld [vmem:[%s307 + $0x4] sm:$0xf]
        %v375 = vld [vmem:[%s307 + $0x8] sm:$0xf]
        %v376 = vld [vmem:[%s307 + $0xc] sm:$0xf]
        %v377 = vld [vmem:[%s307 + $0x10] sm:$0xf]
        %v378 = vld [vmem:[%s307 + $0x14] sm:$0xf]
        %v379 = vld [vmem:[%s307 + $0x18] sm:$0xf]
        %v380 = vld [vmem:[%s307 + $0x1c] sm:$0xf]
        %v381 = vld [vmem:[%s307 + $0x20] sm:$0xf]
        %v382 = vld [vmem:[%s307 + $0x24] sm:$0xf]
        %v383 = vld [vmem:[%s307 + $0x28] sm:$0xf]
        %v384 = vld [vmem:[%s307 + $0x2c] sm:$0xf]
        %v385 = vld [vmem:[%s307 + $0x30] sm:$0xf]
        %v386 = vld [vmem:[%s307 + $0x34] sm:$0xf]
        %v387 = vld [vmem:[%s307 + $0x38] sm:$0xf]
        %v388 = vld [vmem:[%s307 + $0x3c] sm:$0xf]
        %v389 = vld [vmem:[%s350] sm:$0x1]
        %v391 = vlaneseq
        %v392 = vshrl.u32 %v391, 7
        %v393 = vsub.s32 0, %v392
        %v394 = vrot.slane %v389, %v393
        %v412 = vunpack.c.l.b16 %v373
        %v413 = vunpack.c.l.b16 %v374
        %v414 = vunpack.c.l.b16 %v375
        %v415 = vunpack.c.l.b16 %v376
        %v416 = vunpack.c.l.b16 %v377
        %v417 = vunpack.c.l.b16 %v378
        %v418 = vunpack.c.l.b16 %v379
        %v419 = vunpack.c.l.b16 %v380
        %v420 = vunpack.c.l.b16 %v381
        %v421 = vunpack.c.l.b16 %v382
        %v422 = vunpack.c.l.b16 %v383
        %v423 = vunpack.c.l.b16 %v384
        %v424 = vunpack.c.l.b16 %v385
        %v425 = vunpack.c.l.b16 %v386
        %v426 = vunpack.c.l.b16 %v387
        %v427 = vunpack.c.l.b16 %v388
        %v428 = vpack.c.b16 %v413, %v412
        %v429 = vpack.c.b16 %v415, %v414
        %v430 = vpack.c.b16 %v417, %v416
        %v431 = vpack.c.b16 %v419, %v418
        %v432 = vpack.c.b16 %v421, %v420
        %v433 = vpack.c.b16 %v423, %v422
        %v434 = vpack.c.b16 %v425, %v424
        %v435 = vpack.c.b16 %v427, %v426
        %444 = vmatprep.subr.bf16.mxu0 0
        %445 = vmatpush1.bf16.msra.mxu0 %v435
        %446 = vmatprep.subr.bf16.mxu0 0
        %447 = vmatpush1.bf16.msra.mxu0 %v434
        %448 = vmatprep.subr.bf16.mxu0 0
        %449 = vmatpush1.bf16.msra.mxu0 %v433
        %450 = vmatprep.subr.bf16.mxu0 0
        %451 = vmatpush1.bf16.msra.mxu0 %v432
        %452 = vmatprep.subr.bf16.mxu0 0
        %453 = vmatpush1.bf16.msra.mxu0 %v431
        %454 = vmatprep.subr.bf16.mxu0 0
        %455 = vmatpush1.bf16.msra.mxu0 %v430
        %456 = vmatprep.subr.bf16.mxu0 0
        %457 = vmatpush1.bf16.msra.mxu0 %v429
        %458 = vmatprep.subr.bf16.mxu0 0
        %459 = vmatpush1.bf16.msra.mxu0 %v428
        %460 = vmatprep.subr.bf16.mxu0 0
        %461 = vmatpush2.bf16.msra.mxu0 0
        %462 = vmatprep.subr.bf16.mxu0 0
        %463 = vmatpush2.bf16.msra.mxu0 0
        %464 = vmatprep.subr.bf16.mxu0 0
        %465 = vmatpush2.bf16.msra.mxu0 0
        %466 = vmatprep.subr.bf16.mxu0 0
        %467 = vmatpush2.bf16.msra.mxu0 0
        %468 = vmatprep.subr.bf16.mxu0 0
        %469 = vmatpush2.bf16.msra.mxu0 0
        %470 = vmatprep.subr.bf16.mxu0 0
        %471 = vmatpush2.bf16.msra.mxu0 0
        %472 = vmatprep.subr.bf16.mxu0 0
        %473 = vmatpush2.bf16.msra.mxu0 0
        %474 = vmatprep.subr.bf16.mxu0 0
        %475 = vmatpush2.bf16.msra.mxu0 0
        %476 = vmatprep.mubr.bf16.mxu0 0
        %477 = vmatmul.mubr.bf16.gmra.mxu0 %v372
        %v478 = vpop.f32.mrf.mxu0
        %v479 = vadd.f32 %v394, %v478
        %v480 = vpop.f32.mrf.mxu0
        %v481 = vpop.f32.mrf.mxu0
        %v482 = vpop.f32.mrf.mxu0
        %483 = vdwg.mxu0
        %484 = vst [vmem:[%s358] sm:$0x3f] %v479
        %v485 = vld [vmem:[#allocation2] sm:$0x3f]
        %vm486 = vcmask 1045504
        %v487 = vsel %vm486, %v479, -inf
        %488 = vmax.xlane.f32.xlu0 %v487
        %v489 = vpop.xlane.xlu0 %488
        %v490 = vmax.f32 %v485, %v489
        %v491 = vld [vmem:[#allocation3] sm:$0x3f]
        %v492 = vsub.f32 %v485, %v490
        %v493 = vmul.f32 %v492, 1.442695
        %v494 = vpow.pop %v493
        %v495 = vmul.f32 %v491, %v494
        %497 = vset.pattern.permute.xlu0 0
        %498 = vperm.xlu0 %497, %v490
        %v499 = vpop.permute.xlu0 %498
        %v501 = vsub.f32 %v479, %v499
        %v502 = vmul.f32 %v501, 1.442695
        %v503 = vpow.pop %v502
        %v504 = vsel %vm486, %v503, 0.0
        %505 = vadd.xlane.f32.xlu0 %v504
        %v506 = vpop.xlane.xlu0 %505
        %v507 = vadd.f32 %v495, %v506
        %vm508 = vcmask 5120
        %509 = vst.msk [vmem:[#allocation3] sm:$0x3f] %vm508, %v507
        %510 = vst.msk [vmem:[#allocation2] sm:$0x3f] %vm508, %v490
        %p511 = scmp.eq.s32.totalorder %s21, 1
        // Predicated region
        $region78: #{decoder_gru_decode.4} parent=68 // pred_check
          %p512 = pneg %p511
        $region79: #{decoder_gru_decode.4} parent=68 // pred_check_branch
          %514 = sbr.rel (%p512) target = $region81
        $region80: #{decoder_gru_decode.4} parent=68 // pred_region
          %v515 = vld [vmem:[#allocation2] sm:$0x3f]
          %v516 = vld [vmem:[#allocation3] sm:$0x3f]
          %v517 = vlog2.pop %v516
          %v518 = vmul.f32 %v517, 0.6931472
          %v519 = vadd.f32 %v515, %v518
          %520 = vst.msk [vmem:[%s362] sm:$0x3f] %vm508, %v519
        $region81: #{decoder_gru_decode.4} parent=68 // pred_fallthru
          _
        %p521 = scmp.lt.s32.totalorder %s20, 0
        %s522 = scalar_select %p521, %s20, 0
        %p523 = scmp.lt.s32.totalorder %s21, 1
        %s524 = scalar_select %p523, %s21, 1
        %s525 = smul.addr %s522, 2
        %s526 = sadd.s32 %s524, %s525
        %s527 = smul.addr %s526, 8
        %s528 = scalar_lea.vmem %s3, %s527
        %p529 = scmp.lt.s32.totalorder %s20, 0
        %s530 = scalar_select %p529, %s20, 0
        %s531 = smul.addr %s530, 8
        %s532 = scalar_lea.vmem %s4, %s531
        // Predicated region
        $region82: #{decoder_gru_decode.4} parent=68 // pred_check
          %p533 = pneg %p126
        $region83: #{decoder_gru_decode.4} parent=68 // pred_check_branch
          %535 = sbr.rel (%p533) target = $region85
        $region84: #{decoder_gru_decode.4} parent=68 // pred_region
          _
        $region85: #{decoder_gru_decode.4} parent=68 // pred_fallthru
          _
        // Predicated region
        $region86: #{decoder_gru_decode.4} parent=68 // pred_check
          %p536 = pneg %p152
        $region87: #{decoder_gru_decode.4} parent=68 // pred_check_branch
          %538 = sbr.rel (%p536) target = $region89
        $region88: #{decoder_gru_decode.4} parent=68 // pred_region
          _
        $region89: #{decoder_gru_decode.4} parent=68 // pred_fallthru
          _
        // Predicated region
        $region90: #{decoder_gru_decode.4} parent=68 // pred_check
          %p539 = pneg %p152
        $region91: #{decoder_gru_decode.4} parent=68 // pred_check_branch
          %541 = sbr.rel (%p539) target = $region93
        $region92: #{decoder_gru_decode.4} parent=68 // pred_region
          %p542 = scmp.lt.s32.totalorder %s20, 0
          %s543 = scalar_select %p542, %s20, 0
          %s544 = smul.addr %s543, 8
          %s545 = scalar_lea.vmem %s4, %s544
        $region93: #{decoder_gru_decode.4} parent=68 // pred_fallthru
          _
      $region69: #{decoder_gru_decode.4} parent=5 // pred_fallthru
        _
      %p546 = scmp.le.s32.totalorder 2, %s11
      // Predicated region
      $region94: #{decoder_gru_decode.4} parent=5 // pred_check
        %p547 = pneg %p546
      $region95: #{decoder_gru_decode.4} parent=5 // pred_check_branch
        %549 = sbr.rel (%p547) target = $region97
      $region96: #{decoder_gru_decode.4} parent=5 // pred_region
        %s550 = ssub.s32 %s11, 2
        // Predicated region
        $region98: #{decoder_gru_decode.4} parent=96 // pred_check
          %p551 = pneg %p132
        $region99: #{decoder_gru_decode.4} parent=96 // pred_check_branch
          %553 = sbr.rel (%p551) target = $region101
        $region100: #{decoder_gru_decode.4} parent=96 // pred_region
          %p554 = scmp.lt.s32.totalorder %s22, 0
          %s555 = scalar_select %p554, %s22, 0
          %p556 = scmp.lt.s32.totalorder %s23, 1
          %s557 = scalar_select %p556, %s23, 1
          %s558 = smul.addr %s555, 2
          %s559 = sadd.s32 %s557, %s558
          %s560 = smul.addr %s559, 8
          %s561 = scalar_lea.vmem %s3, %s560
        $region101: #{decoder_gru_decode.4} parent=96 // pred_fallthru
          _
      $region97: #{decoder_gru_decode.4} parent=5 // pred_fallthru
        _
    $region6: #{decoder_gru_decode.4} parent=1 // loop_footer
      %s15 = sadd.s32 1, %s11
    $region7: #{decoder_gru_decode.4} parent=1 // loop_footer_branch
      %10 = sbr.rel target = $region3
    $region8: #{decoder_gru_decode.4} parent=1 // loop_exit
      _

// kernel: decoder_gru_decode.3
$region0: #{decoder_gru_decode.3}
  #allocation0 [shape = 'u32[]', space=smem, size = 0x4, offset = 0x4, fixed_abs, tag = 'smem constant byte address 0x4 - core index']
  #allocation1 [shape = 'u32[144,128]{1,0:T(1,128)}', space=vmem, size = 0x12000, scoped, tag = 'internal scratch']
  #allocation2 [shape = 'f32[6,384]{1,0:T(8,128)}', space=vmem, size = 0x3000, scoped, tag = 'scratch operand']
  %s0 = inlined_call_operand.vmem [shape: f32[6,128], index: 0, kind: input, shape index: {}]
  %s1 = inlined_call_operand.vmem [shape: f32[1,128], index: 1, kind: input, shape index: {}]
  %s2 = inlined_call_operand.hbm [shape: bf16[128,384], index: 2, kind: input, shape index: {}]
  %s3 = inlined_call_operand.vmem [shape: f32[1,384], index: 3, kind: input, shape index: {}]
  %s4 = inlined_call_operand.hbm [shape: bf16[128,384], index: 4, kind: input, shape index: {}]
  %s5 = inlined_call_operand.vmem [shape: f32[1,128], index: 5, kind: input, shape index: {}]
  %s6 = inlined_call_operand.vmem [shape: f32[6,128], index: 6, kind: output, shape index: {}]
  %s7 = sld [smem:[#allocation0]]
  $region49: #{decoder_gru_decode.3} parent=0
    _
  %s9 = ssub.s32 1, %s7
  %s10 = scalar_select 0, %s9, %s7
  $region1: #{decoder_gru_decode.3} parent=0
    #allocation3 [shape = 'u8[98304]{0}', space=vmem, size = 0x18000, scoped, tag = 'input window, operand 2, single buffered']
    #allocation4 [shape = 's32[1]{0}', space=sflag, size = 0x4, scoped, tag = 'scoped memory for decoder_gru_decode.3']
    #allocation5 [shape = 'u8[98304]{0}', space=vmem, size = 0x18000, scoped, tag = 'input window, operand 4, single buffered']
    #allocation6 [shape = 's32[1]{0}', space=sflag, size = 0x4, scoped, tag = 'scoped memory for decoder_gru_decode.3']
    %11 = vsyncpa [#allocation4], 0
    %12 = vsyncpa [#allocation6], 0
    // Predicated region
    $region2: #{decoder_gru_decode.3} parent=1 // pred_check
      _
    $region3: #{decoder_gru_decode.3} parent=1 // pred_check_branch
      %14 = sbr.rel (0) target = $region5
    $region4: #{decoder_gru_decode.3} parent=1 // pred_region
      _
    $region5: #{decoder_gru_decode.3} parent=1 // pred_fallthru
      _
    // Predicated region
    $region6: #{decoder_gru_decode.3} parent=1 // pred_check
      _
    $region7: #{decoder_gru_decode.3} parent=1 // pred_check_branch
      %16 = sbr.rel (0) target = $region9
    $region8: #{decoder_gru_decode.3} parent=1 // pred_region
      _
    $region9: #{decoder_gru_decode.3} parent=1 // pred_fallthru
      _
    // Predicated region
    $region10: #{decoder_gru_decode.3} parent=1 // pred_check
      _
    $region11: #{decoder_gru_decode.3} parent=1 // pred_check_branch
      %18 = sbr.rel (0) target = $region13
    $region12: #{decoder_gru_decode.3} parent=1 // pred_region
      %s20 = ssub.s32 3072, 3072
      %21 = vsyncadd [#allocation4], %s20
      %s22 = sshll.u32 [#allocation3], 4
      %s23 = int_to_ptr.vmem [resolvable:$true] %s22
      %28 = dma.hbm_to_vmem [thread:$0]  %s2, 3072, %s23, [#allocation4], 192, 192, 12
    $region13: #{decoder_gru_decode.3} parent=1 // pred_fallthru
      _
    // Predicated region
    $region14: #{decoder_gru_decode.3} parent=1 // pred_check
      _
    $region15: #{decoder_gru_decode.3} parent=1 // pred_check_branch
      %30 = sbr.rel (0) target = $region17
    $region16: #{decoder_gru_decode.3} parent=1 // pred_region
      _
    $region17: #{decoder_gru_decode.3} parent=1 // pred_fallthru
      _
    // Predicated region
    $region18: #{decoder_gru_decode.3} parent=1 // pred_check
      _
    $region19: #{decoder_gru_decode.3} parent=1 // pred_check_branch
      %32 = sbr.rel (0) target = $region21
    $region20: #{decoder_gru_decode.3} parent=1 // pred_region
      %s34 = ssub.s32 3072, 3072
      %35 = vsyncadd [#allocation6], %s34
      %s36 = sshll.u32 [#allocation5], 4
      %s37 = int_to_ptr.vmem [resolvable:$true] %s36
      %42 = dma.hbm_to_vmem [thread:$0]  %s4, 3072, %s37, [#allocation6], 192, 192, 12
    $region21: #{decoder_gru_decode.3} parent=1 // pred_fallthru
      _
    // Predicated region
    $region22: #{decoder_gru_decode.3} parent=1 // pred_check
      _
    $region23: #{decoder_gru_decode.3} parent=1 // pred_check_branch
      %44 = sbr.rel (0) target = $region25
    $region24: #{decoder_gru_decode.3} parent=1 // pred_region
      _
    $region25: #{decoder_gru_decode.3} parent=1 // pred_fallthru
      _
    // Predicated region
    $region26: #{decoder_gru_decode.3} parent=1 // pred_check
      _
    $region27: #{decoder_gru_decode.3} parent=1 // pred_check_branch
      %46 = sbr.rel (0) target = $region29
    $region28: #{decoder_gru_decode.3} parent=1 // pred_region
      %47 = dma.done [#allocation4], 3072
    $region29: #{decoder_gru_decode.3} parent=1 // pred_fallthru
      _
    // Predicated region
    $region30: #{decoder_gru_decode.3} parent=1 // pred_check
      _
    $region31: #{decoder_gru_decode.3} parent=1 // pred_check_branch
      %49 = sbr.rel (0) target = $region33
    $region32: #{decoder_gru_decode.3} parent=1 // pred_region
      %50 = dma.done [#allocation6], 3072
    $region33: #{decoder_gru_decode.3} parent=1 // pred_fallthru
      _
    %v52 = vld [vmem:[%s0] sm:$0x3f]
    %v53 = vmax.f32 %v52, 0.0
    %v54 = vpack.c.bf16 %v53, %v53
    %v55 = vld [vmem:[#allocation3] sm:$0xff]
    %v56 = vld [vmem:[#allocation3 + $0x8] sm:$0xf]
    %v57 = vld [vmem:[#allocation3 + $0xc] sm:$0xff]
    %v58 = vld [vmem:[#allocation3 + $0x14] sm:$0xf]
    %v59 = vld [vmem:[#allocation3 + $0x18] sm:$0xff]
    %v60 = vld [vmem:[#allocation3 + $0x20] sm:$0xf]
    %v61 = vld [vmem:[#allocation3 + $0x24] sm:$0xff]
    %v62 = vld [vmem:[#allocation3 + $0x2c] sm:$0xf]
    %v63 = vld [vmem:[#allocation3 + $0x30] sm:$0xff]
    %v64 = vld [vmem:[#allocation3 + $0x38] sm:$0xf]
    %v65 = vld [vmem:[#allocation3 + $0x3c] sm:$0xff]
    %v66 = vld [vmem:[#allocation3 + $0x44] sm:$0xf]
    %v67 = vld [vmem:[#allocation3 + $0x48] sm:$0xff]
    %v68 = vld [vmem:[#allocation3 + $0x50] sm:$0xf]
    %v69 = vld [vmem:[#allocation3 + $0x54] sm:$0xff]
    %v70 = vld [vmem:[#allocation3 + $0x5c] sm:$0xf]
    %v71 = vld [vmem:[#allocation3 + $0x60] sm:$0xff]
    %v72 = vld [vmem:[#allocation3 + $0x68] sm:$0xf]
    %v73 = vld [vmem:[#allocation3 + $0x6c] sm:$0xff]
    %v74 = vld [vmem:[#allocation3 + $0x74] sm:$0xf]
    %v75 = vld [vmem:[#allocation3 + $0x78] sm:$0xff]
    %v76 = vld [vmem:[#allocation3 + $0x80] sm:$0xf]
    %v77 = vld [vmem:[#allocation3 + $0x84] sm:$0xff]
    %v78 = vld [vmem:[#allocation3 + $0x8c] sm:$0xf]
    %v79 = vld [vmem:[#allocation3 + $0x90] sm:$0xff]
    %v80 = vld [vmem:[#allocation3 + $0x98] sm:$0xf]
    %v81 = vld [vmem:[#allocation3 + $0x9c] sm:$0xff]
    %v82 = vld [vmem:[#allocation3 + $0xa4] sm:$0xf]
    %v83 = vld [vmem:[#allocation3 + $0xa8] sm:$0xff]
    %v84 = vld [vmem:[#allocation3 + $0xb0] sm:$0xf]
    %v85 = vld [vmem:[#allocation3 + $0xb4] sm:$0xff]
    %v86 = vld [vmem:[#allocation3 + $0xbc] sm:$0xf]
    %v87 = vld [vmem:[%s3] sm:$0x7]
    %v89 = vlaneseq
    %v90 = vshrl.u32 %v89, 7
    %v91 = vsub.s32 0, %v90
    %v92 = vrot.slane %v87, %v91
    %v93 = vlaneseq
    %v94 = vshrl.u32 %v93, 7
    %v95 = vsub.s32 1, %v94
    %v96 = vrot.slane %v87, %v95
    %v97 = vlaneseq
    %v98 = vshrl.u32 %v97, 7
    %v99 = vsub.s32 2, %v98
    %v100 = vrot.slane %v87, %v99
    %v136 = vunpack.c.l.b16 %v55
    %v137 = vunpack.c.h.b16 %v55
    %v138 = vunpack.c.l.b16 %v56
    %v139 = vunpack.c.l.b16 %v57
    %v140 = vunpack.c.h.b16 %v57
    %v141 = vunpack.c.l.b16 %v58
    %v142 = vunpack.c.l.b16 %v59
    %v143 = vunpack.c.h.b16 %v59
    %v144 = vunpack.c.l.b16 %v60
    %v145 = vunpack.c.l.b16 %v61
    %v146 = vunpack.c.h.b16 %v61
    %v147 = vunpack.c.l.b16 %v62
    %v148 = vunpack.c.l.b16 %v63
    %v149 = vunpack.c.h.b16 %v63
    %v150 = vunpack.c.l.b16 %v64
    %v151 = vunpack.c.l.b16 %v65
    %v152 = vunpack.c.h.b16 %v65
    %v153 = vunpack.c.l.b16 %v66
    %v154 = vunpack.c.l.b16 %v67
    %v155 = vunpack.c.h.b16 %v67
    %v156 = vunpack.c.l.b16 %v68
    %v157 = vunpack.c.l.b16 %v69
    %v158 = vunpack.c.h.b16 %v69
    %v159 = vunpack.c.l.b16 %v70
    %v160 = vunpack.c.l.b16 %v71
    %v161 = vunpack.c.h.b16 %v71
    %v162 = vunpack.c.l.b16 %v72
    %v163 = vunpack.c.l.b16 %v73
    %v164 = vunpack.c.h.b16 %v73
    %v165 = vunpack.c.l.b16 %v74
    %v166 = vunpack.c.l.b16 %v75
    %v167 = vunpack.c.h.b16 %v75
    %v168 = vunpack.c.l.b16 %v76
    %v169 = vunpack.c.l.b16 %v77
    %v170 = vunpack.c.h.b16 %v77
    %v171 = vunpack.c.l.b16 %v78
    %v172 = vunpack.c.l.b16 %v79
    %v173 = vunpack.c.h.b16 %v79
    %v174 = vunpack.c.l.b16 %v80
    %v175 = vunpack.c.l.b16 %v81
    %v176 = vunpack.c.h.b16 %v81
    %v177 = vunpack.c.l.b16 %v82
    %v178 = vunpack.c.l.b16 %v83
    %v179 = vunpack.c.h.b16 %v83
    %v180 = vunpack.c.l.b16 %v84
    %v181 = vunpack.c.l.b16 %v85
    %v182 = vunpack.c.h.b16 %v85
    %v183 = vunpack.c.l.b16 %v86
    %v184 = vpack.c.b16 %v139, %v136
    %v185 = vpack.c.b16 %v140, %v137
    %v186 = vpack.c.b16 %v141, %v138
    %v187 = vpack.c.b16 %v145, %v142
    %v188 = vpack.c.b16 %v146, %v143
    %v189 = vpack.c.b16 %v147, %v144
    %v190 = vpack.c.b16 %v151, %v148
    %v191 = vpack.c.b16 %v152, %v149
    %v192 = vpack.c.b16 %v153, %v150
    %v193 = vpack.c.b16 %v157, %v154
    %v194 = vpack.c.b16 %v158, %v155
    %v195 = vpack.c.b16 %v159, %v156
    %v196 = vpack.c.b16 %v163, %v160
    %v197 = vpack.c.b16 %v164, %v161
    %v198 = vpack.c.b16 %v165, %v162
    %v199 = vpack.c.b16 %v169, %v166
    %v200 = vpack.c.b16 %v170, %v167
    %v201 = vpack.c.b16 %v171, %v168
    %v202 = vpack.c.b16 %v175, %v172
    %v203 = vpack.c.b16 %v176, %v173
    %v204 = vpack.c.b16 %v177, %v174
    %v205 = vpack.c.b16 %v181, %v178
    %v206 = vpack.c.b16 %v182, %v179
    %v207 = vpack.c.b16 %v183, %v180
    %232 = vmatprep.subr.bf16.mxu0 %v206
    %233 = vmatpush1.bf16.msra.mxu0 %v205
    %234 = vmatprep.subr.bf16.mxu0 %v203
    %235 = vmatpush1.bf16.msra.mxu0 %v202
    %236 = vmatprep.subr.bf16.mxu0 %v200
    %237 = vmatpush1.bf16.msra.mxu0 %v199
    %238 = vmatprep.subr.bf16.mxu0 %v197
    %239 = vmatpush1.bf16.msra.mxu0 %v196
    %240 = vmatprep.subr.bf16.mxu0 %v194
    %241 = vmatpush1.bf16.msra.mxu0 %v193
    %242 = vmatprep.subr.bf16.mxu0 %v191
    %243 = vmatpush1.bf16.msra.mxu0 %v190
    %244 = vmatprep.subr.bf16.mxu0 %v188
    %245 = vmatpush1.bf16.msra.mxu0 %v187
    %246 = vmatprep.subr.bf16.mxu0 %v185
    %247 = vmatpush1.bf16.msra.mxu0 %v184
    %248 = vmatprep.subr.bf16.mxu0 0
    %249 = vmatpush2.bf16.msra.mxu0 0
    %250 = vmatprep.subr.bf16.mxu0 0
    %251 = vmatpush2.bf16.msra.mxu0 0
    %252 = vmatprep.subr.bf16.mxu0 0
    %253 = vmatpush2.bf16.msra.mxu0 0
    %254 = vmatprep.subr.bf16.mxu0 0
    %255 = vmatpush2.bf16.msra.mxu0 0
    %256 = vmatprep.subr.bf16.mxu0 0
    %257 = vmatpush2.bf16.msra.mxu0 0
    %258 = vmatprep.subr.bf16.mxu0 0
    %259 = vmatpush2.bf16.msra.mxu0 0
    %260 = vmatprep.subr.bf16.mxu0 0
    %261 = vmatpush2.bf16.msra.mxu0 0
    %262 = vmatprep.subr.bf16.mxu0 0
    %263 = vmatpush2.bf16.msra.mxu0 0
    %264 = vmatprep.mubr.bf16.mxu0 0
    %265 = vmatmul.mubr.bf16.gmra.mxu0 %v54
    %v266 = vpop.f32.mrf.mxu0
    %v267 = vadd.f32 %v92, %v266
    %v268 = vpop.f32.mrf.mxu0
    %v269 = vadd.f32 %v96, %v268
    %v270 = vpop.f32.mrf.mxu0
    %v271 = vpop.f32.mrf.mxu0
    %272 = vdwg.mxu0
    %273 = vmatprep.subr.bf16.mxu0 0
    %274 = vmatpush1.bf16.msra.mxu0 %v207
    %275 = vmatprep.subr.bf16.mxu0 0
    %276 = vmatpush1.bf16.msra.mxu0 %v204
    %277 = vmatprep.subr.bf16.mxu0 0
    %278 = vmatpush1.bf16.msra.mxu0 %v201
    %279 = vmatprep.subr.bf16.mxu0 0
    %280 = vmatpush1.bf16.msra.mxu0 %v198
    %281 = vmatprep.subr.bf16.mxu0 0
    %282 = vmatpush1.bf16.msra.mxu0 %v195
    %283 = vmatprep.subr.bf16.mxu0 0
    %284 = vmatpush1.bf16.msra.mxu0 %v192
    %285 = vmatprep.subr.bf16.mxu0 0
    %286 = vmatpush1.bf16.msra.mxu0 %v189
    %287 = vmatprep.subr.bf16.mxu0 0
    %288 = vmatpush1.bf16.msra.mxu0 %v186
    %289 = vmatprep.subr.bf16.mxu0 0
    %290 = vmatpush2.bf16.msra.mxu0 0
    %291 = vmatprep.subr.bf16.mxu0 0
    %292 = vmatpush2.bf16.msra.mxu0 0
    %293 = vmatprep.subr.bf16.mxu0 0
    %294 = vmatpush2.bf16.msra.mxu0 0
    %295 = vmatprep.subr.bf16.mxu0 0
    %296 = vmatpush2.bf16.msra.mxu0 0
    %297 = vmatprep.subr.bf16.mxu0 0
    %298 = vmatpush2.bf16.msra.mxu0 0
    %299 = vmatprep.subr.bf16.mxu0 0
    %300 = vmatpush2.bf16.msra.mxu0 0
    %301 = vmatprep.subr.bf16.mxu0 0
    %302 = vmatpush2.bf16.msra.mxu0 0
    %303 = vmatprep.subr.bf16.mxu0 0
    %304 = vmatpush2.bf16.msra.mxu0 0
    %305 = vmatprep.mubr.bf16.mxu0 0
    %306 = vmatmul.mubr.bf16.gmra.mxu0 %v54
    %v307 = vpop.f32.mrf.mxu0
    %v308 = vadd.f32 %v100, %v307
    %v309 = vpop.f32.mrf.mxu0
    %v310 = vpop.f32.mrf.mxu0
    %v311 = vpop.f32.mrf.mxu0
    %312 = vdwg.mxu0
    %313 = vst [vmem:[#allocation2] sm:$0x3f] %v267
    %314 = vst [vmem:[#allocation2 + $0x8] sm:$0x3f] %v269
    %315 = vst [vmem:[#allocation2 + $0x10] sm:$0x3f] %v308
    %v316 = vld [vmem:[%s5] sm:$0x1]
    %v317 = vld [vmem:[%s1] sm:$0x1]
    loop: start=0, step=1, limit=6
    $region34: #{decoder_gru_decode.3} parent=1 // loop_pre_header
      _
    $region35: #{decoder_gru_decode.3} parent=1 // loop_header
      %s319 = sphi 0, %s323
      %p320 = scmp.ge.s32.totalorder %s319, 6
      %v324 = vphi %v317, %v614
    $region36: #{decoder_gru_decode.3} parent=1 // loop_header_branch
      %322 = sbr.rel (%p320) target = $region40
    $region37: #{decoder_gru_decode.3} parent=1 // loop_body
      %s325 = sshra.s32 %s319, 3
      %s326 = sand.u32 %s319, 7
      %s327 = sshra.s32 %s319, 3
      %s328 = sand.u32 %s319, 7
      %s329 = smul.u32 %s325, 3
      %s330 = smul.u32 %s329, 8
      %s331 = sadd.s32 %s330, %s328
      %s332 = scalar_lea.vmem [#allocation2], %s331
      %v333 = vld [vmem:[%s332] ss:$8 sm:$0x7]
      %v334 = vpack.c.bf16 %v324, %v324
      %v335 = vld [vmem:[#allocation5] sm:$0xff]
      %v336 = vld [vmem:[#allocation5 + $0x8] sm:$0xf]
      %v337 = vld [vmem:[#allocation5 + $0xc] sm:$0xff]
      %v338 = vld [vmem:[#allocation5 + $0x14] sm:$0xf]
      %v339 = vld [vmem:[#allocation5 + $0x18] sm:$0xff]
      %v340 = vld [vmem:[#allocation5 + $0x20] sm:$0xf]
      %v341 = vld [vmem:[#allocation5 + $0x24] sm:$0xff]
      %v342 = vld [vmem:[#allocation5 + $0x2c] sm:$0xf]
      %v343 = vld [vmem:[#allocation5 + $0x30] sm:$0xff]
      %v344 = vld [vmem:[#allocation5 + $0x38] sm:$0xf]
      %v345 = vld [vmem:[#allocation5 + $0x3c] sm:$0xff]
      %v346 = vld [vmem:[#allocation5 + $0x44] sm:$0xf]
      %v347 = vld [vmem:[#allocation5 + $0x48] sm:$0xff]
      %v348 = vld [vmem:[#allocation5 + $0x50] sm:$0xf]
      %v349 = vld [vmem:[#allocation5 + $0x54] sm:$0xff]
      %v350 = vld [vmem:[#allocation5 + $0x5c] sm:$0xf]
      %v351 = vld [vmem:[#allocation5 + $0x60] sm:$0xff]
      %v352 = vld [vmem:[#allocation5 + $0x68] sm:$0xf]
      %v353 = vld [vmem:[#allocation5 + $0x6c] sm:$0xff]
      %v354 = vld [vmem:[#allocation5 + $0x74] sm:$0xf]
      %v355 = vld [vmem:[#allocation5 + $0x78] sm:$0xff]
      %v356 = vld [vmem:[#allocation5 + $0x80] sm:$0xf]
      %v357 = vld [vmem:[#allocation5 + $0x84] sm:$0xff]
      %v358 = vld [vmem:[#allocation5 + $0x8c] sm:$0xf]
      %v359 = vld [vmem:[#allocation5 + $0x90] sm:$0xff]
      %v360 = vld [vmem:[#allocation5 + $0x98] sm:$0xf]
      %v361 = vld [vmem:[#allocation5 + $0x9c] sm:$0xff]
      %v362 = vld [vmem:[#allocation5 + $0xa4] sm:$0xf]
      %v363 = vld [vmem:[#allocation5 + $0xa8] sm:$0xff]
      %v364 = vld [vmem:[#allocation5 + $0xb0] sm:$0xf]
      %v365 = vld [vmem:[#allocation5 + $0xb4] sm:$0xff]
      %v366 = vld [vmem:[#allocation5 + $0xbc] sm:$0xf]
      %v399 = vunpack.c.l.b16 %v335
      %v400 = vunpack.c.h.b16 %v335
      %v401 = vunpack.c.l.b16 %v336
      %v402 = vunpack.c.l.b16 %v337
      %v403 = vunpack.c.h.b16 %v337
      %v404 = vunpack.c.l.b16 %v338
      %v405 = vunpack.c.l.b16 %v339
      %v406 = vunpack.c.h.b16 %v339
      %v407 = vunpack.c.l.b16 %v340
      %v408 = vunpack.c.l.b16 %v341
      %v409 = vunpack.c.h.b16 %v341
      %v410 = vunpack.c.l.b16 %v342
      %v411 = vunpack.c.l.b16 %v343
      %v412 = vunpack.c.h.b16 %v343
      %v413 = vunpack.c.l.b16 %v344
      %v414 = vunpack.c.l.b16 %v345
      %v415 = vunpack.c.h.b16 %v345
      %v416 = vunpack.c.l.b16 %v346
      %v417 = vunpack.c.l.b16 %v347
      %v418 = vunpack.c.h.b16 %v347
      %v419 = vunpack.c.l.b16 %v348
      %v420 = vunpack.c.l.b16 %v349
      %v421 = vunpack.c.h.b16 %v349
      %v422 = vunpack.c.l.b16 %v350
      %v423 = vunpack.c.l.b16 %v351
      %v424 = vunpack.c.h.b16 %v351
      %v425 = vunpack.c.l.b16 %v352
      %v426 = vunpack.c.l.b16 %v353
      %v427 = vunpack.c.h.b16 %v353
      %v428 = vunpack.c.l.b16 %v354
      %v429 = vunpack.c.l.b16 %v355
      %v430 = vunpack.c.h.b16 %v355
      %v431 = vunpack.c.l.b16 %v356
      %v432 = vunpack.c.l.b16 %v357
      %v433 = vunpack.c.h.b16 %v357
      %v434 = vunpack.c.l.b16 %v358
      %v435 = vunpack.c.l.b16 %v359
      %v436 = vunpack.c.h.b16 %v359
      %v437 = vunpack.c.l.b16 %v360
      %v438 = vunpack.c.l.b16 %v361
      %v439 = vunpack.c.h.b16 %v361
      %v440 = vunpack.c.l.b16 %v362
      %v441 = vunpack.c.l.b16 %v363
      %v442 = vunpack.c.h.b16 %v363
      %v443 = vunpack.c.l.b16 %v364
      %v444 = vunpack.c.l.b16 %v365
      %v445 = vunpack.c.h.b16 %v365
      %v446 = vunpack.c.l.b16 %v366
      %v447 = vpack.c.b16 %v402, %v399
      %v448 = vpack.c.b16 %v403, %v400
      %v449 = vpack.c.b16 %v404, %v401
      %v450 = vpack.c.b16 %v408, %v405
      %v451 = vpack.c.b16 %v409, %v406
      %v452 = vpack.c.b16 %v410, %v407
      %v453 = vpack.c.b16 %v414, %v411
      %v454 = vpack.c.b16 %v415, %v412
      %v455 = vpack.c.b16 %v416, %v413
      %v456 = vpack.c.b16 %v420, %v417
      %v457 = vpack.c.b16 %v421, %v418
      %v458 = vpack.c.b16 %v422, %v419
      %v459 = vpack.c.b16 %v426, %v423
      %v460 = vpack.c.b16 %v427, %v424
      %v461 = vpack.c.b16 %v428, %v425
      %v462 = vpack.c.b16 %v432, %v429
      %v463 = vpack.c.b16 %v433, %v430
      %v464 = vpack.c.b16 %v434, %v431
      %v465 = vpack.c.b16 %v438, %v435
      %v466 = vpack.c.b16 %v439, %v436
      %v467 = vpack.c.b16 %v440, %v437
      %v468 = vpack.c.b16 %v444, %v441
      %v469 = vpack.c.b16 %v445, %v442
      %v470 = vpack.c.b16 %v446, %v443
      %495 = vmatprep.subr.bf16.mxu0 %v469
      %496 = vmatpush1.bf16.msra.mxu0 %v468
      %497 = vmatprep.subr.bf16.mxu0 %v466
      %498 = vmatpush1.bf16.msra.mxu0 %v465
      %499 = vmatprep.subr.bf16.mxu0 %v463
      %500 = vmatpush1.bf16.msra.mxu0 %v462
      %501 = vmatprep.subr.bf16.mxu0 %v460
      %502 = vmatpush1.bf16.msra.mxu0 %v459
      %503 = vmatprep.subr.bf16.mxu0 %v457
      %504 = vmatpush1.bf16.msra.mxu0 %v456
      %505 = vmatprep.subr.bf16.mxu0 %v454
      %506 = vmatpush1.bf16.msra.mxu0 %v453
      %507 = vmatprep.subr.bf16.mxu0 %v451
      %508 = vmatpush1.bf16.msra.mxu0 %v450
      %509 = vmatprep.subr.bf16.mxu0 %v448
      %510 = vmatpush1.bf16.msra.mxu0 %v447
      %511 = vmatprep.subr.bf16.mxu0 0
      %512 = vmatpush2.bf16.msra.mxu0 0
      %513 = vmatprep.subr.bf16.mxu0 0
      %514 = vmatpush2.bf16.msra.mxu0 0
      %515 = vmatprep.subr.bf16.mxu0 0
      %516 = vmatpush2.bf16.msra.mxu0 0
      %517 = vmatprep.subr.bf16.mxu0 0
      %518 = vmatpush2.bf16.msra.mxu0 0
      %519 = vmatprep.subr.bf16.mxu0 0
      %520 = vmatpush2.bf16.msra.mxu0 0
      %521 = vmatprep.subr.bf16.mxu0 0
      %522 = vmatpush2.bf16.msra.mxu0 0
      %523 = vmatprep.subr.bf16.mxu0 0
      %524 = vmatpush2.bf16.msra.mxu0 0
      %525 = vmatprep.subr.bf16.mxu0 0
      %526 = vmatpush2.bf16.msra.mxu0 0
      %527 = vmatprep.mubr.bf16.mxu0 0
      %528 = vmatmul.mubr.bf16.gmra.mxu0 %v334
      %v529 = vpop.f32.mrf.mxu0
      %v530 = vadd.f32 0.0, %v529
      %v531 = vpop.f32.mrf.mxu0
      %v532 = vadd.f32 0.0, %v531
      %v533 = vpop.f32.mrf.mxu0
      %v534 = vpop.f32.mrf.mxu0
      %535 = vdwg.mxu0
      %536 = vmatprep.subr.bf16.mxu0 0
      %537 = vmatpush1.bf16.msra.mxu0 %v470
      %538 = vmatprep.subr.bf16.mxu0 0
      %539 = vmatpush1.bf16.msra.mxu0 %v467
      %540 = vmatprep.subr.bf16.mxu0 0
      %541 = vmatpush1.bf16.msra.mxu0 %v464
      %542 = vmatprep.subr.bf16.mxu0 0
      %543 = vmatpush1.bf16.msra.mxu0 %v461
      %544 = vmatprep.subr.bf16.mxu0 0
      %545 = vmatpush1.bf16.msra.mxu0 %v458
      %546 = vmatprep.subr.bf16.mxu0 0
      %547 = vmatpush1.bf16.msra.mxu0 %v455
      %548 = vmatprep.subr.bf16.mxu0 0
      %549 = vmatpush1.bf16.msra.mxu0 %v452
      %550 = vmatprep.subr.bf16.mxu0 0
      %551 = vmatpush1.bf16.msra.mxu0 %v449
      %552 = vmatprep.subr.bf16.mxu0 0
      %553 = vmatpush2.bf16.msra.mxu0 0
      %554 = vmatprep.subr.bf16.mxu0 0
      %555 = vmatpush2.bf16.msra.mxu0 0
      %556 = vmatprep.subr.bf16.mxu0 0
      %557 = vmatpush2.bf16.msra.mxu0 0
      %558 = vmatprep.subr.bf16.mxu0 0
      %559 = vmatpush2.bf16.msra.mxu0 0
      %560 = vmatprep.subr.bf16.mxu0 0
      %561 = vmatpush2.bf16.msra.mxu0 0
      %562 = vmatprep.subr.bf16.mxu0 0
      %563 = vmatpush2.bf16.msra.mxu0 0
      %564 = vmatprep.subr.bf16.mxu0 0
      %565 = vmatpush2.bf16.msra.mxu0 0
      %566 = vmatprep.subr.bf16.mxu0 0
      %567 = vmatpush2.bf16.msra.mxu0 0
      %568 = vmatprep.mubr.bf16.mxu0 0
      %569 = vmatmul.mubr.bf16.gmra.mxu0 %v334
      %v570 = vpop.f32.mrf.mxu0
      %v571 = vadd.f32 0.0, %v570
      %v572 = vpop.f32.mrf.mxu0
      %v573 = vpop.f32.mrf.mxu0
      %v574 = vpop.f32.mrf.mxu0
      %575 = vdwg.mxu0
      %v578 = vcombine.low %v530, %v532
      %v580 = vunpack.c.l.s4 1966171168
      %v581 = vunpack.c.0.s8 %v580
      %v582 = vlaneseq
      %v583 = vshrl.u32 %v582, 7
      %v584 = vsub.s32 %v581, %v583
      %v585 = vrot.slane %v578, %v584
      %v587 = vunpack.c.l.s4 1966171168
      %v588 = vunpack.c.0.s8 %v587
      %v589 = vlaneseq
      %v590 = vshrl.u32 %v589, 7
      %v591 = vsub.s32 %v588, %v590
      %v592 = vrot.slane %v585, %v591
      %v594 = vadd.f32 %v333, %v592
      %v595 = vxor.u32 %v594, 2147483648
      %v596 = vmul.f32 %v595, 1.442695
      %v597 = vpow.pop %v596
      %v598 = vadd.f32 %v597, 1.0
      %v599 = vrcp.pop %v598
      %v600 = vmul.f32 1.0, %v599
      %v601 = vadd.f32 %v571, %v316
      %v602 = vmul.f32 %v600, %v601
      %v604 = vrot.slane %v333, 2
      %v606 = vadd.f32 %v604, %v602
      %v607 = vtanh.pop %v606
      %v609 = vrot.slane %v600, 1
      %v611 = vsub.f32 1.0, %v609
      %v612 = vmul.f32 %v611, %v607
      %v613 = vmul.f32 %v609, %v324
      %v614 = vadd.f32 %v612, %v613
      %s615 = scalar_lea.vmem %s6, %s319
      %616 = vst [vmem:[%s615] sm:$0x1] %v614
    $region38: #{decoder_gru_decode.3} parent=1 // loop_footer
      %s323 = sadd.s32 1, %s319
    $region39: #{decoder_gru_decode.3} parent=1 // loop_footer_branch
      %318 = sbr.rel target = $region35
    $region40: #{decoder_gru_decode.3} parent=1 // loop_exit
      _
    // Predicated region
    $region41: #{decoder_gru_decode.3} parent=1 // pred_check
      _
    $region42: #{decoder_gru_decode.3} parent=1 // pred_check_branch
      %618 = sbr.rel (0) target = $region44
    $region43: #{decoder_gru_decode.3} parent=1 // pred_region
      _
    $region44: #{decoder_gru_decode.3} parent=1 // pred_fallthru
      _
    // Predicated region
    $region45: #{decoder_gru_decode.3} parent=1 // pred_check
      _
    $region46: #{decoder_gru_decode.3} parent=1 // pred_check_branch
      %620 = sbr.rel (0) target = $region48
    $region47: #{decoder_gru_decode.3} parent=1 // pred_region
      _
    $region48: #{decoder_gru_decode.3} parent=1 // pred_fallthru
      _
    %621 = vsyncpa [#allocation4], 1
    %622 = vsyncpa [#allocation6], 1

</llo_original>
